<compile_context>
chip_gen: v6e
topology: v6e:2x2x1
jax: 0.10.0
libtpu: 0.0.40
codegen_flags: <defaults>
</compile_context>

<pallas_src>
import functools
import math

import jax
import jax.numpy as jnp
from jax.experimental import pallas as pl
from jax.experimental.pallas import tpu as pltpu

NEG_SLOPE = 0.1      # LeakyReLU slope used as the module's `act`
_TM_TARGET = 512     # M-tile (lane) size; 2 bufs * (K + Cout) * TM stays far below
                     # the 32 MiB scoped-VMEM default on all of v5e/v6e/v7x.


def _round_up(x, m):
    return (x + m - 1) // m * m


# ---------------------------------------------------------------------------
# Pallas kernel: fused  act(W2 @ X_T + b)  — the hot path of every convolution
# (regular convs via im2col columns, deformable conv via its sampled columns).
# Weights/bias blocks are grid-invariant (resident in VMEM); X_T / out are
# streamed lane-dense over the M grid axis with automatic double buffering.
# ---------------------------------------------------------------------------
def _matmul_bias_act_kernel(w_ref, b_ref, x_ref, o_ref, *, apply_act):
    acc = jnp.dot(w_ref[...], x_ref[...], preferred_element_type=jnp.float32)
    acc = acc + b_ref[...]                       # bias in f32
    if apply_act:
        acc = jnp.where(acc >= 0, acc, acc * NEG_SLOPE)
    o_ref[...] = acc


def matmul_bias_act_t(w2, b, xt, apply_act):
    """out_T = act(w2 @ xt + b[:, None]).

    w2: (Cout, K) bf16, b: (Cout,) f32, xt: (K, M) bf16 -> (Cout, M) f32.
    M is padded to a multiple of 128 (lane-dense blocks) and tiled over the grid.
    """
    cout, k = w2.shape
    m = xt.shape[1]
    m_pad = _round_up(m, 128)
    tm = min(_TM_TARGET, m_pad)
    m_pad = _round_up(m_pad, tm)
    if m_pad != m:
        xt = jnp.pad(xt, ((0, 0), (0, m_pad - m)))

    kernel = functools.partial(_matmul_bias_act_kernel, apply_act=apply_act)
    out = pl.pallas_call(
        kernel,
        out_shape=jax.ShapeDtypeStruct((cout, m_pad), jnp.float32),
        grid=(m_pad // tm,),
        in_specs=[
            pl.BlockSpec((cout, k), lambda i: (0, 0)),   # weights: VMEM-resident
            pl.BlockSpec((cout, 1), lambda i: (0, 0)),   # bias:    VMEM-resident
            pl.BlockSpec((k, tm), lambda i: (0, i)),     # columns: streamed
        ],
        out_specs=pl.BlockSpec((cout, tm), lambda i: (0, i)),
        compiler_params=pltpu.CompilerParams(
            dimension_semantics=("parallel",)),
    )(w2, b.reshape(cout, 1), xt)
    return out[:, :m] if m_pad != m else out


# ---------------------------------------------------------------------------
# 3x3 conv (stride 1 or 2, padding 1) = transposed im2col (bf16) + Pallas matmul.
# ---------------------------------------------------------------------------
def conv3x3(x, w, b, stride=1, act=True):
    """x: (Cin, N, H, W) f32;  w: (Cout, Cin, 3, 3) (torch layout);  b: (Cout,)."""
    cin, n, h, wd = x.shape
    cout = w.shape[0]
    ho = (h + 2 - 3) // stride + 1
    wo = (wd + 2 - 3) // stride + 1
    xp = jnp.pad(x.astype(jnp.bfloat16), ((0, 0), (0, 0), (1, 1), (1, 1)))
    taps = []
    for ki in range(3):
        for kj in range(3):
            taps.append(xp[:, :, ki:ki + (ho - 1) * stride + 1:stride,
                              kj:kj + (wo - 1) * stride + 1:stride])
    # K ordering (ci, ki, kj) matches w.reshape(Cout, Cin*9)
    xt = jnp.stack(taps, axis=1).reshape(cin * 9, n * ho * wo)    # (K, M) bf16
    w2 = w.reshape(cout, cin * 9).astype(jnp.bfloat16)
    out_t = matmul_bias_act_t(w2, b, xt, apply_act=act)
    return out_t.reshape(cout, n, ho, wo)


# ---------------------------------------------------------------------------
# Bilinear x2 upsample, align_corners=False (matches F.interpolate).  Fixed
# 0.25/0.75 taps expressed as static shifts — no gathers.
# ---------------------------------------------------------------------------
def _up2_axis(x, axis):
    nd = x.ndim
    def sl(a, b):
        s = [slice(None)] * nd
        s[axis] = slice(a, b)
        return tuple(s)
    prev = jnp.concatenate([x[sl(0, 1)], x[sl(0, -1)]], axis=axis)
    nxt = jnp.concatenate([x[sl(1, None)], x[sl(-1, None)]], axis=axis)
    even = 0.25 * prev + 0.75 * x          # out[2i]   = .25*in[max(i-1,0)] + .75*in[i]
    odd = 0.75 * x + 0.25 * nxt            # out[2i+1] = .75*in[i] + .25*in[min(i+1,S-1)]
    out = jnp.stack([even, odd], axis=axis + 1)
    shape = list(x.shape)
    shape[axis] = 2 * x.shape[axis]
    return out.reshape(shape)


def upsample_x2_bilinear(x):
    """x: (C, N, H, W) -> (C, N, 2H, 2W)."""
    x = _up2_axis(x, 2)
    x = _up2_axis(x, 3)
    return x


# ---------------------------------------------------------------------------
# DCNv2Pack: conv_offset (Pallas matmul conv) -> split into (o1, o2, mask),
# modulated deformable bilinear sampling (XLA gather), then the K=9*Cin
# reduction matmul in the Pallas kernel.
# ---------------------------------------------------------------------------
def dcn_v2_pack(x, feat, offset_conv_wb, dcn_wb, dg):
    cin, n, h, wd = x.shape
    kk = 9
    cpg = cin // dg
    hw = h * wd

    ow, ob = offset_conv_wb
    co = conv3x3(feat, ow, ob, stride=1, act=False)        # (dg*27, N, H, W)

    # torchvision layout: channel = g*2K + 2k (dy), g*2K + 2k + 1 (dx)
    off = co[: 2 * dg * kk].reshape(dg, kk, 2, n, h, wd)
    dy = off[:, :, 0]                                      # (dg, 9, N, H, W)
    dx = off[:, :, 1]
    mask = jax.nn.sigmoid(co[2 * dg * kk:]).reshape(dg, kk, n, h, wd)

    k_i = jnp.repeat(jnp.arange(3, dtype=jnp.float32), 3)  # kernel row per tap
    k_j = jnp.tile(jnp.arange(3, dtype=jnp.float32), 3)    # kernel col per tap
    hh = jnp.arange(h, dtype=jnp.float32)[None, None, None, :, None]
    ww = jnp.arange(wd, dtype=jnp.float32)[None, None, None, None, :]
    ph = hh - 1.0 + k_i[None, :, None, None, None] + dy    # (dg, 9, N, H, W)
    pw = ww - 1.0 + k_j[None, :, None, None, None] + dx

    h0 = jnp.floor(ph)
    w0 = jnp.floor(pw)
    lh = ph - h0
    lw = pw - w0

    xg = x.reshape(dg, cpg, n, hw)                         # group-major channels

    def gather(hc, wc):
        inb = ((hc >= 0) & (hc <= h - 1) & (wc >= 0) & (wc <= wd - 1)).astype(jnp.float32)
        hci = jnp.clip(hc, 0, h - 1).astype(jnp.int32)
        wci = jnp.clip(wc, 0, wd - 1).astype(jnp.int32)
        flat = hci * wd + wci                              # (dg, 9, N, H, W)
        flat_r = jnp.transpose(flat.reshape(dg, kk, n, hw), (0, 2, 1, 3))
        flat_r = flat_r.reshape(dg, 1, n, kk * hw)
        idx = jnp.broadcast_to(flat_r, (dg, cpg, n, kk * hw))
        vals = jnp.take_along_axis(xg, idx, axis=-1)       # (dg, cpg, N, 9*HW)
        vals = vals.reshape(dg, cpg, n, kk, hw)
        vals = jnp.transpose(vals, (0, 1, 3, 2, 4))        # (dg, cpg, 9, N, HW)
        return vals, inb

    def wexp(a):   # (dg, 9, N, H, W) -> (dg, 1, 9, N, HW) broadcast over cpg
        return a.reshape(dg, 1, kk, n, hw)

    v00, b00 = gather(h0, w0)
    v01, b01 = gather(h0, w0 + 1)
    v10, b10 = gather(h0 + 1, w0)
    v11, b11 = gather(h0 + 1, w0 + 1)

    val = (v00 * wexp(b00 * (1 - lh) * (1 - lw))
           + v01 * wexp(b01 * (1 - lh) * lw)
           + v10 * wexp(b10 * lh * (1 - lw))
           + v11 * wexp(b11 * lh * lw))
    val = val * wexp(mask)                                 # modulation

    # K ordering (g, c, k) -> ci*9 + k matches w.reshape(Cout, Cin*9)
    cols_t = val.reshape(cin * kk, n * hw).astype(jnp.bfloat16)

    w, b = dcn_wb
    cout = w.shape[0]
    w2 = w.reshape(cout, cin * kk).astype(jnp.bfloat16)
    out_t = matmul_bias_act_t(w2, b, cols_t, apply_act=False)
    return out_t.reshape(cout, n, h, wd)


# ---------------------------------------------------------------------------
# Parameter init (deterministic; mirrors PyTorch Conv2d default init).
# ---------------------------------------------------------------------------
def conv_params(key, cin, cout, k=3):
    kw, kb = jax.random.split(key)
    bound = 1.0 / math.sqrt(cin * k * k)
    w = jax.random.uniform(kw, (cout, cin, k, k), minval=-bound, maxval=bound,
                           dtype=jnp.float32)
    b = jax.random.uniform(kb, (cout,), minval=-bound, maxval=bound,
                           dtype=jnp.float32)
    return w, b


def init_params(nf, dg, key):
    names = [
        ('down_ref1', nf, nf), ('down_ref2', nf, nf),
        ('down_other1', nf, nf), ('down_other2', nf, nf),
        ('L3_offset1', 2 * nf, nf), ('L3_offset2', nf, nf),
        ('L3_dif1', nf, nf), ('L3_dif2', nf, nf),
        ('L3_dcn_offset', nf, dg * 27), ('L3_dcn', nf, nf),
        ('L3_fuse', 2 * nf, nf),
        ('L2_offset1', 2 * nf, nf), ('L2_offset2', 2 * nf, nf),
        ('L2_offset3', nf, nf),
        ('L2_dif1', nf, nf), ('L2_dif2', nf, nf),
        ('L2_dcn_offset', nf, dg * 27), ('L2_dcn', nf, nf),
        ('L2_fuse', 2 * nf, nf), ('L2_fuseL3', 2 * nf, nf),
        ('L1_offset1', 2 * nf, nf), ('L1_offset2', 2 * nf, nf),
        ('L1_offset3', nf, nf),
        ('L1_dif1', nf, nf), ('L1_dif2', nf, nf),
        ('L1_dcn_offset', nf, dg * 27), ('L1_dcn', nf, nf),
        ('L1_fuse', 2 * nf, nf), ('L1_fuseL2', 2 * nf, nf),
    ]
    keys = jax.random.split(key, len(names))
    return {nm: conv_params(k, ci, co) for (nm, ci, co), k in zip(names, keys)}


# ---------------------------------------------------------------------------
# Forward pass (NCHW API, like the PyTorch module); internal layout (C, N, H, W).
# ---------------------------------------------------------------------------
def multi_pc_aligned_forward(params, ref, other, dg):
    p = params
    ref_c = jnp.transpose(ref, (1, 0, 2, 3))       # (C, N, H, W)
    oth_c = jnp.transpose(other, (1, 0, 2, 3))

    ref_d1 = conv3x3(ref_c, *p['down_ref1'], stride=2, act=True)
    ref_d2 = conv3x3(ref_d1, *p['down_ref2'], stride=2, act=True)
    oth_d1 = conv3x3(oth_c, *p['down_other1'], stride=2, act=True)
    oth_d2 = conv3x3(oth_d1, *p['down_other2'], stride=2, act=True)

    # ---- L3 ----
    l3 = jnp.concatenate([ref_d2, oth_d2], axis=0)
    l3_off = conv3x3(l3, *p['L3_offset1'], act=True)
    l3_off = conv3x3(l3_off, *p['L3_offset2'], act=True)
    l3_dif = ref_d2 - oth_d2
    l3_dif = conv3x3(l3_dif, *p['L3_dif1'], act=True)
    l3_dif = conv3x3(l3_dif, *p['L3_dif2'], act=True)
    l3_dcn = dcn_v2_pack(oth_d2, l3_off, p['L3_dcn_offset'], p['L3_dcn'], dg)
    l3_off_up = upsample_x2_bilinear(l3_off)
    l3_fuse = conv3x3(jnp.concatenate([l3_dif, l3_dcn], axis=0), *p['L3_fuse'], act=True)
    l3_fuse = upsample_x2_bilinear(l3_fuse)

    # ---- L2 ----
    l2 = jnp.concatenate([ref_d1, oth_d1], axis=0)
    l2_off = conv3x3(l2, *p['L2_offset1'], act=True)
    l2_off = conv3x3(jnp.concatenate([l2_off, l3_off_up * 2.0], axis=0),
                     *p['L2_offset2'], act=True)
    l2_off = conv3x3(l2_off, *p['L2_offset3'], act=True)
    l2_dif = ref_d1 - oth_d1
    l2_dif = conv3x3(l2_dif, *p['L2_dif1'], act=True)
    l2_dif = conv3x3(l2_dif, *p['L2_dif2'], act=True)
    l2_dcn = dcn_v2_pack(oth_d1, l2_off, p['L2_dcn_offset'], p['L2_dcn'], dg)
    l2_off_up = upsample_x2_bilinear(l2_off)
    l2_fuse = conv3x3(jnp.concatenate([l2_dif, l2_dcn], axis=0), *p['L2_fuse'], act=True)
    l2_fuse = conv3x3(jnp.concatenate([l2_fuse, l3_fuse], axis=0),
                      *p['L2_fuseL3'], act=True)
    l2_fuse = upsample_x2_bilinear(l2_fuse)

    # ---- L1 ----
    l1 = jnp.concatenate([ref_c, oth_c], axis=0)
    l1_off = conv3x3(l1, *p['L1_offset1'], act=True)
    l1_off = conv3x3(jnp.concatenate([l1_off, l2_off_up * 2.0], axis=0),
                     *p['L1_offset2'], act=True)
    l1_off = conv3x3(l1_off, *p['L1_offset3'], act=True)
    l1_dif = ref_c - oth_c
    l1_dif = conv3x3(l1_dif, *p['L1_dif1'], act=True)
    l1_dif = conv3x3(l1_dif, *p['L1_dif2'], act=True)
    l1_dcn = dcn_v2_pack(oth_c, l1_off, p['L1_dcn_offset'], p['L1_dcn'], dg)
    l1_fuse = conv3x3(jnp.concatenate([l1_dif, l1_dcn], axis=0), *p['L1_fuse'], act=True)
    l1_fuse = conv3x3(jnp.concatenate([l1_fuse, l2_fuse], axis=0),
                      *p['L1_fuseL2'], act=True)
    return jnp.transpose(l1_fuse, (1, 0, 2, 3))    # back to NCHW


if __name__ == "__main__":
    nf = 8
    deformable_groups = 8
    N, H, W = 2, 16, 16

    key = jax.random.PRNGKey(0)
    kp, kr, ko = jax.random.split(key, 3)
    params = init_params(nf, deformable_groups, kp)

    # PyTorch-style NCHW inputs: (N, nf, H, W)
    ref = jax.random.normal(kr, (N, nf, H, W), dtype=jnp.float32)
    other = jax.random.normal(ko, (N, nf, H, W), dtype=jnp.float32)

    fwd = jax.jit(functools.partial(multi_pc_aligned_forward, dg=deformable_groups))
    out = jax.block_until_ready(fwd(params, ref, other))
    assert out.shape == (N, nf, H, W), out.shape
    assert bool(jnp.isfinite(out).all())
    print("KERNEL_OK")
</pallas_src>

<mosaic_0001>
module attributes {stable_mosaic.version = 11 : i64} {
  func.func @_matmul_bias_act_kernel(%arg0: i32, %arg1: memref<8x72xbf16, #tpu.memory_space<vmem>>, %arg2: memref<8x1xf32, #tpu.memory_space<vmem>>, %arg3: memref<72x128xbf16, #tpu.memory_space<vmem>>, %arg4: memref<8x128xf32, #tpu.memory_space<vmem>>) attributes {dimension_semantics = [#tpu.dimension_semantics<parallel>], iteration_bounds = array<i64: 1>, scalar_prefetch = 0 : i64, scratch_operands = 0 : i64, tpu.core_type = #tpu.core_type<tc>, window_params = [{pipeline_mode = #tpu.pipeline_mode<synchronous>, transform_indices = @transform_0, window_bounds = array<i64: 8, 72>}, {pipeline_mode = #tpu.pipeline_mode<synchronous>, transform_indices = @transform_1, window_bounds = array<i64: 8, 1>}, {transform_indices = @transform_2, window_bounds = array<i64: 72, 128>}, {transform_indices = @transform_3, window_bounds = array<i64: 8, 128>}]} {
    %c0 = arith.constant 0 : index
    %c0_0 = arith.constant 0 : index
    %0 = vector.load %arg1[%c0, %c0_0] : memref<8x72xbf16, #tpu.memory_space<vmem>>, vector<8x72xbf16>
    %c0_1 = arith.constant 0 : index
    %c0_2 = arith.constant 0 : index
    %1 = vector.load %arg3[%c0_1, %c0_2] : memref<72x128xbf16, #tpu.memory_space<vmem>>, vector<72x128xbf16>
    %cst = arith.constant dense<0.000000e+00> : vector<8x128xf32>
    %2 = tpu.matmul %0, %1, %cst {dimension_numbers = #tpu.dot_dimension_numbers<[1], [0], [0], [1], [0, 0, 1, 1], [], []>} : vector<8x72xbf16>, vector<72x128xbf16>, vector<8x128xf32> -> vector<8x128xf32>
    %c0_3 = arith.constant 0 : index
    %c0_4 = arith.constant 0 : index
    %3 = vector.load %arg2[%c0_3, %c0_4] : memref<8x1xf32, #tpu.memory_space<vmem>>, vector<8x1xf32>
    %4 = vector.broadcast %3 : vector<8x1xf32> to vector<8x128xf32>
    %5 = arith.addf %2, %4 : vector<8x128xf32>
    %cst_5 = arith.constant 0.000000e+00 : f32
    %6 = vector.broadcast %cst_5 : f32 to vector<8x128xf32>
    %7 = arith.cmpf oge, %5, %6 : vector<8x128xf32>
    %cst_6 = arith.constant 1.000000e-01 : f32
    %8 = vector.broadcast %cst_6 : f32 to vector<8x128xf32>
    %9 = arith.mulf %5, %8 : vector<8x128xf32>
    %10 = arith.select %7, %5, %9 : vector<8x128xi1>, vector<8x128xf32>
    %c0_7 = arith.constant 0 : index
    %c0_8 = arith.constant 0 : index
    %11 = vector.load %arg4[%c0_7, %c0_8] : memref<8x128xf32, #tpu.memory_space<vmem>>, vector<8x128xf32>
    tpu.vector_store %arg4[%c0_7, %c0_8], %10 {strides = array<i32>} : memref<8x128xf32, #tpu.memory_space<vmem>>, vector<8x128xf32>,
    return
  }
  func.func @transform_0(%arg0: i32) -> (i32, i32) {
    %c0_i32 = arith.constant 0 : i32
    %c0_i32_0 = arith.constant 0 : i32
    %c0_i32_1 = arith.constant 0 : i32
    return %c0_i32, %c0_i32_0 : i32, i32
  }
  func.func @transform_1(%arg0: i32) -> (i32, i32) {
    %c0_i32 = arith.constant 0 : i32
    %c0_i32_0 = arith.constant 0 : i32
    %c0_i32_1 = arith.constant 0 : i32
    return %c0_i32, %c0_i32_0 : i32, i32
  }
  func.func @transform_2(%arg0: i32) -> (i32, i32) {
    %c0_i32 = arith.constant 0 : i32
    %c0_i32_0 = arith.constant 0 : i32
    return %c0_i32, %arg0 : i32, i32
  }
  func.func @transform_3(%arg0: i32) -> (i32, i32) {
    %c0_i32 = arith.constant 0 : i32
    %c0_i32_0 = arith.constant 0 : i32
    return %c0_i32, %arg0 : i32, i32
  }
}

module attributes {stable_mosaic.version = 11 : i64} {
  func.func @_matmul_bias_act_kernel(%arg0: i32, %arg1: memref<8x144xbf16, #tpu.memory_space<vmem>>, %arg2: memref<8x1xf32, #tpu.memory_space<vmem>>, %arg3: memref<144x128xbf16, #tpu.memory_space<vmem>>, %arg4: memref<8x128xf32, #tpu.memory_space<vmem>>) attributes {dimension_semantics = [#tpu.dimension_semantics<parallel>], iteration_bounds = array<i64: 1>, scalar_prefetch = 0 : i64, scratch_operands = 0 : i64, tpu.core_type = #tpu.core_type<tc>, window_params = [{pipeline_mode = #tpu.pipeline_mode<synchronous>, transform_indices = @transform_0, window_bounds = array<i64: 8, 144>}, {pipeline_mode = #tpu.pipeline_mode<synchronous>, transform_indices = @transform_1, window_bounds = array<i64: 8, 1>}, {transform_indices = @transform_2, window_bounds = array<i64: 144, 128>}, {transform_indices = @transform_3, window_bounds = array<i64: 8, 128>}]} {
    %c0 = arith.constant 0 : index
    %c0_0 = arith.constant 0 : index
    %0 = vector.load %arg1[%c0, %c0_0] : memref<8x144xbf16, #tpu.memory_space<vmem>>, vector<8x144xbf16>
    %c0_1 = arith.constant 0 : index
    %c0_2 = arith.constant 0 : index
    %1 = vector.load %arg3[%c0_1, %c0_2] : memref<144x128xbf16, #tpu.memory_space<vmem>>, vector<144x128xbf16>
    %cst = arith.constant dense<0.000000e+00> : vector<8x128xf32>
    %2 = tpu.matmul %0, %1, %cst {dimension_numbers = #tpu.dot_dimension_numbers<[1], [0], [0], [1], [0, 0, 1, 1], [], []>} : vector<8x144xbf16>, vector<144x128xbf16>, vector<8x128xf32> -> vector<8x128xf32>
    %c0_3 = arith.constant 0 : index
    %c0_4 = arith.constant 0 : index
    %3 = vector.load %arg2[%c0_3, %c0_4] : memref<8x1xf32, #tpu.memory_space<vmem>>, vector<8x1xf32>
    %4 = vector.broadcast %3 : vector<8x1xf32> to vector<8x128xf32>
    %5 = arith.addf %2, %4 : vector<8x128xf32>
    %cst_5 = arith.constant 0.000000e+00 : f32
    %6 = vector.broadcast %cst_5 : f32 to vector<8x128xf32>
    %7 = arith.cmpf oge, %5, %6 : vector<8x128xf32>
    %cst_6 = arith.constant 1.000000e-01 : f32
    %8 = vector.broadcast %cst_6 : f32 to vector<8x128xf32>
    %9 = arith.mulf %5, %8 : vector<8x128xf32>
    %10 = arith.select %7, %5, %9 : vector<8x128xi1>, vector<8x128xf32>
    %c0_7 = arith.constant 0 : index
    %c0_8 = arith.constant 0 : index
    %11 = vector.load %arg4[%c0_7, %c0_8] : memref<8x128xf32, #tpu.memory_space<vmem>>, vector<8x128xf32>
    tpu.vector_store %arg4[%c0_7, %c0_8], %10 {strides = array<i32>} : memref<8x128xf32, #tpu.memory_space<vmem>>, vector<8x128xf32>,
    return
  }
  func.func @transform_0(%arg0: i32) -> (i32, i32) {
    %c0_i32 = arith.constant 0 : i32
    %c0_i32_0 = arith.constant 0 : i32
    %c0_i32_1 = arith.constant 0 : i32
    return %c0_i32, %c0_i32_0 : i32, i32
  }
  func.func @transform_1(%arg0: i32) -> (i32, i32) {
    %c0_i32 = arith.constant 0 : i32
    %c0_i32_0 = arith.constant 0 : i32
    %c0_i32_1 = arith.constant 0 : i32
    return %c0_i32, %c0_i32_0 : i32, i32
  }
  func.func @transform_2(%arg0: i32) -> (i32, i32) {
    %c0_i32 = arith.constant 0 : i32
    %c0_i32_0 = arith.constant 0 : i32
    return %c0_i32, %arg0 : i32, i32
  }
  func.func @transform_3(%arg0: i32) -> (i32, i32) {
    %c0_i32 = arith.constant 0 : i32
    %c0_i32_0 = arith.constant 0 : i32
    return %c0_i32, %arg0 : i32, i32
  }
}

module attributes {stable_mosaic.version = 11 : i64} {
  func.func @_matmul_bias_act_kernel(%arg0: i32, %arg1: memref<216x72xbf16, #tpu.memory_space<vmem>>, %arg2: memref<216x1xf32, #tpu.memory_space<vmem>>, %arg3: memref<72x128xbf16, #tpu.memory_space<vmem>>, %arg4: memref<216x128xf32, #tpu.memory_space<vmem>>) attributes {dimension_semantics = [#tpu.dimension_semantics<parallel>], iteration_bounds = array<i64: 1>, scalar_prefetch = 0 : i64, scratch_operands = 0 : i64, tpu.core_type = #tpu.core_type<tc>, window_params = [{pipeline_mode = #tpu.pipeline_mode<synchronous>, transform_indices = @transform_0, window_bounds = array<i64: 216, 72>}, {pipeline_mode = #tpu.pipeline_mode<synchronous>, transform_indices = @transform_1, window_bounds = array<i64: 216, 1>}, {transform_indices = @transform_2, window_bounds = array<i64: 72, 128>}, {transform_indices = @transform_3, window_bounds = array<i64: 216, 128>}]} {
    %c0 = arith.constant 0 : index
    %c0_0 = arith.constant 0 : index
    %0 = vector.load %arg1[%c0, %c0_0] : memref<216x72xbf16, #tpu.memory_space<vmem>>, vector<216x72xbf16>
    %c0_1 = arith.constant 0 : index
    %c0_2 = arith.constant 0 : index
    %1 = vector.load %arg3[%c0_1, %c0_2] : memref<72x128xbf16, #tpu.memory_space<vmem>>, vector<72x128xbf16>
    %cst = arith.constant dense<0.000000e+00> : vector<216x128xf32>
    %2 = tpu.matmul %0, %1, %cst {dimension_numbers = #tpu.dot_dimension_numbers<[1], [0], [0], [1], [0, 0, 1, 1], [], []>} : vector<216x72xbf16>, vector<72x128xbf16>, vector<216x128xf32> -> vector<216x128xf32>
    %c0_3 = arith.constant 0 : index
    %c0_4 = arith.constant 0 : index
    %3 = vector.load %arg2[%c0_3, %c0_4] : memref<216x1xf32, #tpu.memory_space<vmem>>, vector<216x1xf32>
    %4 = vector.broadcast %3 : vector<216x1xf32> to vector<216x128xf32>
    %5 = arith.addf %2, %4 : vector<216x128xf32>
    %c0_5 = arith.constant 0 : index
    %c0_6 = arith.constant 0 : index
    %6 = vector.load %arg4[%c0_5, %c0_6] : memref<216x128xf32, #tpu.memory_space<vmem>>, vector<216x128xf32>
    tpu.vector_store %arg4[%c0_5, %c0_6], %5 {strides = array<i32>} : memref<216x128xf32, #tpu.memory_space<vmem>>, vector<216x128xf32>,
    return
  }
  func.func @transform_0(%arg0: i32) -> (i32, i32) {
    %c0_i32 = arith.constant 0 : i32
    %c0_i32_0 = arith.constant 0 : i32
    %c0_i32_1 = arith.constant 0 : i32
    return %c0_i32, %c0_i32_0 : i32, i32
  }
  func.func @transform_1(%arg0: i32) -> (i32, i32) {
    %c0_i32 = arith.constant 0 : i32
    %c0_i32_0 = arith.constant 0 : i32
    %c0_i32_1 = arith.constant 0 : i32
    return %c0_i32, %c0_i32_0 : i32, i32
  }
  func.func @transform_2(%arg0: i32) -> (i32, i32) {
    %c0_i32 = arith.constant 0 : i32
    %c0_i32_0 = arith.constant 0 : i32
    return %c0_i32, %arg0 : i32, i32
  }
  func.func @transform_3(%arg0: i32) -> (i32, i32) {
    %c0_i32 = arith.constant 0 : i32
    %c0_i32_0 = arith.constant 0 : i32
    return %c0_i32, %arg0 : i32, i32
  }
}

module attributes {stable_mosaic.version = 11 : i64} {
  func.func @_matmul_bias_act_kernel(%arg0: i32, %arg1: memref<8x72xbf16, #tpu.memory_space<vmem>>, %arg2: memref<8x1xf32, #tpu.memory_space<vmem>>, %arg3: memref<72x128xbf16, #tpu.memory_space<vmem>>, %arg4: memref<8x128xf32, #tpu.memory_space<vmem>>) attributes {dimension_semantics = [#tpu.dimension_semantics<parallel>], iteration_bounds = array<i64: 1>, scalar_prefetch = 0 : i64, scratch_operands = 0 : i64, tpu.core_type = #tpu.core_type<tc>, window_params = [{pipeline_mode = #tpu.pipeline_mode<synchronous>, transform_indices = @transform_0, window_bounds = array<i64: 8, 72>}, {pipeline_mode = #tpu.pipeline_mode<synchronous>, transform_indices = @transform_1, window_bounds = array<i64: 8, 1>}, {transform_indices = @transform_2, window_bounds = array<i64: 72, 128>}, {transform_indices = @transform_3, window_bounds = array<i64: 8, 128>}]} {
    %c0 = arith.constant 0 : index
    %c0_0 = arith.constant 0 : index
    %0 = vector.load %arg1[%c0, %c0_0] : memref<8x72xbf16, #tpu.memory_space<vmem>>, vector<8x72xbf16>
    %c0_1 = arith.constant 0 : index
    %c0_2 = arith.constant 0 : index
    %1 = vector.load %arg3[%c0_1, %c0_2] : memref<72x128xbf16, #tpu.memory_space<vmem>>, vector<72x128xbf16>
    %cst = arith.constant dense<0.000000e+00> : vector<8x128xf32>
    %2 = tpu.matmul %0, %1, %cst {dimension_numbers = #tpu.dot_dimension_numbers<[1], [0], [0], [1], [0, 0, 1, 1], [], []>} : vector<8x72xbf16>, vector<72x128xbf16>, vector<8x128xf32> -> vector<8x128xf32>
    %c0_3 = arith.constant 0 : index
    %c0_4 = arith.constant 0 : index
    %3 = vector.load %arg2[%c0_3, %c0_4] : memref<8x1xf32, #tpu.memory_space<vmem>>, vector<8x1xf32>
    %4 = vector.broadcast %3 : vector<8x1xf32> to vector<8x128xf32>
    %5 = arith.addf %2, %4 : vector<8x128xf32>
    %c0_5 = arith.constant 0 : index
    %c0_6 = arith.constant 0 : index
    %6 = vector.load %arg4[%c0_5, %c0_6] : memref<8x128xf32, #tpu.memory_space<vmem>>, vector<8x128xf32>
    tpu.vector_store %arg4[%c0_5, %c0_6], %5 {strides = array<i32>} : memref<8x128xf32, #tpu.memory_space<vmem>>, vector<8x128xf32>,
    return
  }
  func.func @transform_0(%arg0: i32) -> (i32, i32) {
    %c0_i32 = arith.constant 0 : i32
    %c0_i32_0 = arith.constant 0 : i32
    %c0_i32_1 = arith.constant 0 : i32
    return %c0_i32, %c0_i32_0 : i32, i32
  }
  func.func @transform_1(%arg0: i32) -> (i32, i32) {
    %c0_i32 = arith.constant 0 : i32
    %c0_i32_0 = arith.constant 0 : i32
    %c0_i32_1 = arith.constant 0 : i32
    return %c0_i32, %c0_i32_0 : i32, i32
  }
  func.func @transform_2(%arg0: i32) -> (i32, i32) {
    %c0_i32 = arith.constant 0 : i32
    %c0_i32_0 = arith.constant 0 : i32
    return %c0_i32, %arg0 : i32, i32
  }
  func.func @transform_3(%arg0: i32) -> (i32, i32) {
    %c0_i32 = arith.constant 0 : i32
    %c0_i32_0 = arith.constant 0 : i32
    return %c0_i32, %arg0 : i32, i32
  }
}

module attributes {stable_mosaic.version = 11 : i64} {
  func.func @_matmul_bias_act_kernel(%arg0: i32, %arg1: memref<8x144xbf16, #tpu.memory_space<vmem>>, %arg2: memref<8x1xf32, #tpu.memory_space<vmem>>, %arg3: memref<144x512xbf16, #tpu.memory_space<vmem>>, %arg4: memref<8x512xf32, #tpu.memory_space<vmem>>) attributes {dimension_semantics = [#tpu.dimension_semantics<parallel>], iteration_bounds = array<i64: 1>, scalar_prefetch = 0 : i64, scratch_operands = 0 : i64, tpu.core_type = #tpu.core_type<tc>, window_params = [{pipeline_mode = #tpu.pipeline_mode<synchronous>, transform_indices = @transform_0, window_bounds = array<i64: 8, 144>}, {pipeline_mode = #tpu.pipeline_mode<synchronous>, transform_indices = @transform_1, window_bounds = array<i64: 8, 1>}, {transform_indices = @transform_2, window_bounds = array<i64: 144, 512>}, {transform_indices = @transform_3, window_bounds = array<i64: 8, 512>}]} {
    %c0 = arith.constant 0 : index
    %c0_0 = arith.constant 0 : index
    %0 = vector.load %arg1[%c0, %c0_0] : memref<8x144xbf16, #tpu.memory_space<vmem>>, vector<8x144xbf16>
    %c0_1 = arith.constant 0 : index
    %c0_2 = arith.constant 0 : index
    %1 = vector.load %arg3[%c0_1, %c0_2] : memref<144x512xbf16, #tpu.memory_space<vmem>>, vector<144x512xbf16>
    %cst = arith.constant dense<0.000000e+00> : vector<8x512xf32>
    %2 = tpu.matmul %0, %1, %cst {dimension_numbers = #tpu.dot_dimension_numbers<[1], [0], [0], [1], [0, 0, 1, 1], [], []>} : vector<8x144xbf16>, vector<144x512xbf16>, vector<8x512xf32> -> vector<8x512xf32>
    %c0_3 = arith.constant 0 : index
    %c0_4 = arith.constant 0 : index
    %3 = vector.load %arg2[%c0_3, %c0_4] : memref<8x1xf32, #tpu.memory_space<vmem>>, vector<8x1xf32>
    %4 = vector.broadcast %3 : vector<8x1xf32> to vector<8x512xf32>
    %5 = arith.addf %2, %4 : vector<8x512xf32>
    %cst_5 = arith.constant 0.000000e+00 : f32
    %6 = vector.broadcast %cst_5 : f32 to vector<8x512xf32>
    %7 = arith.cmpf oge, %5, %6 : vector<8x512xf32>
    %cst_6 = arith.constant 1.000000e-01 : f32
    %8 = vector.broadcast %cst_6 : f32 to vector<8x512xf32>
    %9 = arith.mulf %5, %8 : vector<8x512xf32>
    %10 = arith.select %7, %5, %9 : vector<8x512xi1>, vector<8x512xf32>
    %c0_7 = arith.constant 0 : index
    %c0_8 = arith.constant 0 : index
    %11 = vector.load %arg4[%c0_7, %c0_8] : memref<8x512xf32, #tpu.memory_space<vmem>>, vector<8x512xf32>
    tpu.vector_store %arg4[%c0_7, %c0_8], %10 {strides = array<i32>} : memref<8x512xf32, #tpu.memory_space<vmem>>, vector<8x512xf32>,
    return
  }
  func.func @transform_0(%arg0: i32) -> (i32, i32) {
    %c0_i32 = arith.constant 0 : i32
    %c0_i32_0 = arith.constant 0 : i32
    %c0_i32_1 = arith.constant 0 : i32
    return %c0_i32, %c0_i32_0 : i32, i32
  }
  func.func @transform_1(%arg0: i32) -> (i32, i32) {
    %c0_i32 = arith.constant 0 : i32
    %c0_i32_0 = arith.constant 0 : i32
    %c0_i32_1 = arith.constant 0 : i32
    return %c0_i32, %c0_i32_0 : i32, i32
  }
  func.func @transform_2(%arg0: i32) -> (i32, i32) {
    %c0_i32 = arith.constant 0 : i32
    %c0_i32_0 = arith.constant 0 : i32
    return %c0_i32, %arg0 : i32, i32
  }
  func.func @transform_3(%arg0: i32) -> (i32, i32) {
    %c0_i32 = arith.constant 0 : i32
    %c0_i32_0 = arith.constant 0 : i32
    return %c0_i32, %arg0 : i32, i32
  }
}

module attributes {stable_mosaic.version = 11 : i64} {
  func.func @_matmul_bias_act_kernel(%arg0: i32, %arg1: memref<8x72xbf16, #tpu.memory_space<vmem>>, %arg2: memref<8x1xf32, #tpu.memory_space<vmem>>, %arg3: memref<72x512xbf16, #tpu.memory_space<vmem>>, %arg4: memref<8x512xf32, #tpu.memory_space<vmem>>) attributes {dimension_semantics = [#tpu.dimension_semantics<parallel>], iteration_bounds = array<i64: 1>, scalar_prefetch = 0 : i64, scratch_operands = 0 : i64, tpu.core_type = #tpu.core_type<tc>, window_params = [{pipeline_mode = #tpu.pipeline_mode<synchronous>, transform_indices = @transform_0, window_bounds = array<i64: 8, 72>}, {pipeline_mode = #tpu.pipeline_mode<synchronous>, transform_indices = @transform_1, window_bounds = array<i64: 8, 1>}, {transform_indices = @transform_2, window_bounds = array<i64: 72, 512>}, {transform_indices = @transform_3, window_bounds = array<i64: 8, 512>}]} {
    %c0 = arith.constant 0 : index
    %c0_0 = arith.constant 0 : index
    %0 = vector.load %arg1[%c0, %c0_0] : memref<8x72xbf16, #tpu.memory_space<vmem>>, vector<8x72xbf16>
    %c0_1 = arith.constant 0 : index
    %c0_2 = arith.constant 0 : index
    %1 = vector.load %arg3[%c0_1, %c0_2] : memref<72x512xbf16, #tpu.memory_space<vmem>>, vector<72x512xbf16>
    %cst = arith.constant dense<0.000000e+00> : vector<8x512xf32>
    %2 = tpu.matmul %0, %1, %cst {dimension_numbers = #tpu.dot_dimension_numbers<[1], [0], [0], [1], [0, 0, 1, 1], [], []>} : vector<8x72xbf16>, vector<72x512xbf16>, vector<8x512xf32> -> vector<8x512xf32>
    %c0_3 = arith.constant 0 : index
    %c0_4 = arith.constant 0 : index
    %3 = vector.load %arg2[%c0_3, %c0_4] : memref<8x1xf32, #tpu.memory_space<vmem>>, vector<8x1xf32>
    %4 = vector.broadcast %3 : vector<8x1xf32> to vector<8x512xf32>
    %5 = arith.addf %2, %4 : vector<8x512xf32>
    %cst_5 = arith.constant 0.000000e+00 : f32
    %6 = vector.broadcast %cst_5 : f32 to vector<8x512xf32>
    %7 = arith.cmpf oge, %5, %6 : vector<8x512xf32>
    %cst_6 = arith.constant 1.000000e-01 : f32
    %8 = vector.broadcast %cst_6 : f32 to vector<8x512xf32>
    %9 = arith.mulf %5, %8 : vector<8x512xf32>
    %10 = arith.select %7, %5, %9 : vector<8x512xi1>, vector<8x512xf32>
    %c0_7 = arith.constant 0 : index
    %c0_8 = arith.constant 0 : index
    %11 = vector.load %arg4[%c0_7, %c0_8] : memref<8x512xf32, #tpu.memory_space<vmem>>, vector<8x512xf32>
    tpu.vector_store %arg4[%c0_7, %c0_8], %10 {strides = array<i32>} : memref<8x512xf32, #tpu.memory_space<vmem>>, vector<8x512xf32>,
    return
  }
  func.func @transform_0(%arg0: i32) -> (i32, i32) {
    %c0_i32 = arith.constant 0 : i32
    %c0_i32_0 = arith.constant 0 : i32
    %c0_i32_1 = arith.constant 0 : i32
    return %c0_i32, %c0_i32_0 : i32, i32
  }
  func.func @transform_1(%arg0: i32) -> (i32, i32) {
    %c0_i32 = arith.constant 0 : i32
    %c0_i32_0 = arith.constant 0 : i32
    %c0_i32_1 = arith.constant 0 : i32
    return %c0_i32, %c0_i32_0 : i32, i32
  }
  func.func @transform_2(%arg0: i32) -> (i32, i32) {
    %c0_i32 = arith.constant 0 : i32
    %c0_i32_0 = arith.constant 0 : i32
    return %c0_i32, %arg0 : i32, i32
  }
  func.func @transform_3(%arg0: i32) -> (i32, i32) {
    %c0_i32 = arith.constant 0 : i32
    %c0_i32_0 = arith.constant 0 : i32
    return %c0_i32, %arg0 : i32, i32
  }
}

module attributes {stable_mosaic.version = 11 : i64} {
  func.func @_matmul_bias_act_kernel(%arg0: i32, %arg1: memref<216x72xbf16, #tpu.memory_space<vmem>>, %arg2: memref<216x1xf32, #tpu.memory_space<vmem>>, %arg3: memref<72x512xbf16, #tpu.memory_space<vmem>>, %arg4: memref<216x512xf32, #tpu.memory_space<vmem>>) attributes {dimension_semantics = [#tpu.dimension_semantics<parallel>], iteration_bounds = array<i64: 1>, scalar_prefetch = 0 : i64, scratch_operands = 0 : i64, tpu.core_type = #tpu.core_type<tc>, window_params = [{pipeline_mode = #tpu.pipeline_mode<synchronous>, transform_indices = @transform_0, window_bounds = array<i64: 216, 72>}, {pipeline_mode = #tpu.pipeline_mode<synchronous>, transform_indices = @transform_1, window_bounds = array<i64: 216, 1>}, {transform_indices = @transform_2, window_bounds = array<i64: 72, 512>}, {transform_indices = @transform_3, window_bounds = array<i64: 216, 512>}]} {
    %c0 = arith.constant 0 : index
    %c0_0 = arith.constant 0 : index
    %0 = vector.load %arg1[%c0, %c0_0] : memref<216x72xbf16, #tpu.memory_space<vmem>>, vector<216x72xbf16>
    %c0_1 = arith.constant 0 : index
    %c0_2 = arith.constant 0 : index
    %1 = vector.load %arg3[%c0_1, %c0_2] : memref<72x512xbf16, #tpu.memory_space<vmem>>, vector<72x512xbf16>
    %cst = arith.constant dense<0.000000e+00> : vector<216x512xf32>
    %2 = tpu.matmul %0, %1, %cst {dimension_numbers = #tpu.dot_dimension_numbers<[1], [0], [0], [1], [0, 0, 1, 1], [], []>} : vector<216x72xbf16>, vector<72x512xbf16>, vector<216x512xf32> -> vector<216x512xf32>
    %c0_3 = arith.constant 0 : index
    %c0_4 = arith.constant 0 : index
    %3 = vector.load %arg2[%c0_3, %c0_4] : memref<216x1xf32, #tpu.memory_space<vmem>>, vector<216x1xf32>
    %4 = vector.broadcast %3 : vector<216x1xf32> to vector<216x512xf32>
    %5 = arith.addf %2, %4 : vector<216x512xf32>
    %c0_5 = arith.constant 0 : index
    %c0_6 = arith.constant 0 : index
    %6 = vector.load %arg4[%c0_5, %c0_6] : memref<216x512xf32, #tpu.memory_space<vmem>>, vector<216x512xf32>
    tpu.vector_store %arg4[%c0_5, %c0_6], %5 {strides = array<i32>} : memref<216x512xf32, #tpu.memory_space<vmem>>, vector<216x512xf32>,
    return
  }
  func.func @transform_0(%arg0: i32) -> (i32, i32) {
    %c0_i32 = arith.constant 0 : i32
    %c0_i32_0 = arith.constant 0 : i32
    %c0_i32_1 = arith.constant 0 : i32
    return %c0_i32, %c0_i32_0 : i32, i32
  }
  func.func @transform_1(%arg0: i32) -> (i32, i32) {
    %c0_i32 = arith.constant 0 : i32
    %c0_i32_0 = arith.constant 0 : i32
    %c0_i32_1 = arith.constant 0 : i32
    return %c0_i32, %c0_i32_0 : i32, i32
  }
  func.func @transform_2(%arg0: i32) -> (i32, i32) {
    %c0_i32 = arith.constant 0 : i32
    %c0_i32_0 = arith.constant 0 : i32
    return %c0_i32, %arg0 : i32, i32
  }
  func.func @transform_3(%arg0: i32) -> (i32, i32) {
    %c0_i32 = arith.constant 0 : i32
    %c0_i32_0 = arith.constant 0 : i32
    return %c0_i32, %arg0 : i32, i32
  }
}

module attributes {stable_mosaic.version = 11 : i64} {
  func.func @_matmul_bias_act_kernel(%arg0: i32, %arg1: memref<8x72xbf16, #tpu.memory_space<vmem>>, %arg2: memref<8x1xf32, #tpu.memory_space<vmem>>, %arg3: memref<72x512xbf16, #tpu.memory_space<vmem>>, %arg4: memref<8x512xf32, #tpu.memory_space<vmem>>) attributes {dimension_semantics = [#tpu.dimension_semantics<parallel>], iteration_bounds = array<i64: 1>, scalar_prefetch = 0 : i64, scratch_operands = 0 : i64, tpu.core_type = #tpu.core_type<tc>, window_params = [{pipeline_mode = #tpu.pipeline_mode<synchronous>, transform_indices = @transform_0, window_bounds = array<i64: 8, 72>}, {pipeline_mode = #tpu.pipeline_mode<synchronous>, transform_indices = @transform_1, window_bounds = array<i64: 8, 1>}, {transform_indices = @transform_2, window_bounds = array<i64: 72, 512>}, {transform_indices = @transform_3, window_bounds = array<i64: 8, 512>}]} {
    %c0 = arith.constant 0 : index
    %c0_0 = arith.constant 0 : index
    %0 = vector.load %arg1[%c0, %c0_0] : memref<8x72xbf16, #tpu.memory_space<vmem>>, vector<8x72xbf16>
    %c0_1 = arith.constant 0 : index
    %c0_2 = arith.constant 0 : index
    %1 = vector.load %arg3[%c0_1, %c0_2] : memref<72x512xbf16, #tpu.memory_space<vmem>>, vector<72x512xbf16>
    %cst = arith.constant dense<0.000000e+00> : vector<8x512xf32>
    %2 = tpu.matmul %0, %1, %cst {dimension_numbers = #tpu.dot_dimension_numbers<[1], [0], [0], [1], [0, 0, 1, 1], [], []>} : vector<8x72xbf16>, vector<72x512xbf16>, vector<8x512xf32> -> vector<8x512xf32>
    %c0_3 = arith.constant 0 : index
    %c0_4 = arith.constant 0 : index
    %3 = vector.load %arg2[%c0_3, %c0_4] : memref<8x1xf32, #tpu.memory_space<vmem>>, vector<8x1xf32>
    %4 = vector.broadcast %3 : vector<8x1xf32> to vector<8x512xf32>
    %5 = arith.addf %2, %4 : vector<8x512xf32>
    %c0_5 = arith.constant 0 : index
    %c0_6 = arith.constant 0 : index
    %6 = vector.load %arg4[%c0_5, %c0_6] : memref<8x512xf32, #tpu.memory_space<vmem>>, vector<8x512xf32>
    tpu.vector_store %arg4[%c0_5, %c0_6], %5 {strides = array<i32>} : memref<8x512xf32, #tpu.memory_space<vmem>>, vector<8x512xf32>,
    return
  }
  func.func @transform_0(%arg0: i32) -> (i32, i32) {
    %c0_i32 = arith.constant 0 : i32
    %c0_i32_0 = arith.constant 0 : i32
    %c0_i32_1 = arith.constant 0 : i32
    return %c0_i32, %c0_i32_0 : i32, i32
  }
  func.func @transform_1(%arg0: i32) -> (i32, i32) {
    %c0_i32 = arith.constant 0 : i32
    %c0_i32_0 = arith.constant 0 : i32
    %c0_i32_1 = arith.constant 0 : i32
    return %c0_i32, %c0_i32_0 : i32, i32
  }
  func.func @transform_2(%arg0: i32) -> (i32, i32) {
    %c0_i32 = arith.constant 0 : i32
    %c0_i32_0 = arith.constant 0 : i32
    return %c0_i32, %arg0 : i32, i32
  }
  func.func @transform_3(%arg0: i32) -> (i32, i32) {
    %c0_i32 = arith.constant 0 : i32
    %c0_i32_0 = arith.constant 0 : i32
    return %c0_i32, %arg0 : i32, i32
  }
}

</mosaic_0001>

<llo_original>
// kernel: multi_pc_aligned_forward.29
$region0: #{multi_pc_aligned_forward.29}
  #allocation0 [shape = 'u32[]', space=smem, size = 0x4, offset = 0x4, fixed_abs, tag = 'smem constant byte address 0x4 - core index']
  #allocation1 [shape = 'u32[144,128]{1,0:T(1,128)}', space=vmem, size = 0x12000, scoped, tag = 'internal scratch']
  %s0 = inlined_call_operand.vmem [shape: bf16[8,72], index: 0, kind: input, shape index: {}]
  %s1 = inlined_call_operand.vmem [shape: f32[8,1], index: 1, kind: input, shape index: {}]
  %s2 = inlined_call_operand.vmem [shape: bf16[72,128], index: 2, kind: input, shape index: {}]
  %s3 = inlined_call_operand.vmem [shape: f32[8,128], index: 3, kind: output, shape index: {}]
  %s4 = sld [smem:[#allocation0]]
  $region22: #{multi_pc_aligned_forward.29} parent=0
    _
  %s6 = ssub.s32 1, %s4
  %s7 = scalar_select 0, %s6, %s4
  // Predicated region
  $region2: #{multi_pc_aligned_forward.29} parent=0 // pred_check
    _
  $region3: #{multi_pc_aligned_forward.29} parent=0 // pred_check_branch
    %9 = sbr.rel (0) target = $region5
  $region4: #{multi_pc_aligned_forward.29} parent=0 // pred_region
    _
  $region5: #{multi_pc_aligned_forward.29} parent=0 // pred_fallthru
    _
  // Predicated region
  $region6: #{multi_pc_aligned_forward.29} parent=0 // pred_check
    _
  $region7: #{multi_pc_aligned_forward.29} parent=0 // pred_check_branch
    %11 = sbr.rel (0) target = $region9
  $region8: #{multi_pc_aligned_forward.29} parent=0 // pred_region
    _
  $region9: #{multi_pc_aligned_forward.29} parent=0 // pred_fallthru
    _
  // Predicated region
  $region10: #{multi_pc_aligned_forward.29} parent=0 // pred_check
    _
  $region11: #{multi_pc_aligned_forward.29} parent=0 // pred_check_branch
    %13 = sbr.rel (0) target = $region13
  $region12: #{multi_pc_aligned_forward.29} parent=0 // pred_region
    _
  $region13: #{multi_pc_aligned_forward.29} parent=0 // pred_fallthru
    _
  %v15 = vld [vmem:[%s0] sm:$0xf]
  %v16 = vld [vmem:[%s2] sm:$0xf]
  %v17 = vld [vmem:[%s2 + $0x4] sm:$0xf]
  %v18 = vld [vmem:[%s2 + $0x8] sm:$0xf]
  %v19 = vld [vmem:[%s2 + $0xc] sm:$0xf]
  %v20 = vld [vmem:[%s2 + $0x10] sm:$0xf]
  %v21 = vld [vmem:[%s2 + $0x14] sm:$0xf]
  %v22 = vld [vmem:[%s2 + $0x18] sm:$0xf]
  %v23 = vld [vmem:[%s2 + $0x1c] sm:$0xf]
  %v24 = vld [vmem:[%s2 + $0x20] sm:$0xf]
  %v25 = vld [vmem:[%s1] sm:$0xff]
  %27 = vset.pattern.permute.xlu0 0
  %28 = vperm.xlu0 %27, %v25
  %v29 = vpop.permute.xlu0 %28
  %v40 = vunpack.c.l.b16 %v16
  %v41 = vunpack.c.l.b16 %v17
  %v42 = vunpack.c.l.b16 %v18
  %v43 = vunpack.c.l.b16 %v19
  %v44 = vunpack.c.l.b16 %v20
  %v45 = vunpack.c.l.b16 %v21
  %v46 = vunpack.c.l.b16 %v22
  %v47 = vunpack.c.l.b16 %v23
  %v48 = vunpack.c.l.b16 %v24
  %v49 = vpack.c.b16 %v41, %v40
  %v50 = vpack.c.b16 %v43, %v42
  %v51 = vpack.c.b16 %v45, %v44
  %v52 = vpack.c.b16 %v47, %v46
  %v53 = vpack.c.b16 %v48, %v48
  %vm58 = vcmask 588800
  %v60 = vsel %vm58, %v15, 0
  %vm62 = vcmask 1043456
  %v64 = vsel %vm62, %v53, 0
  %66 = vmatprep.subr.bf16.mxu0 0
  %67 = vmatpush1.bf16.msra.mxu0 0
  %68 = vmatprep.subr.bf16.mxu0 0
  %69 = vmatpush1.bf16.msra.mxu0 0
  %70 = vmatprep.subr.bf16.mxu0 0
  %71 = vmatpush1.bf16.msra.mxu0 0
  %72 = vmatprep.subr.bf16.mxu0 0
  %73 = vmatpush1.bf16.msra.mxu0 %v64
  %74 = vmatprep.subr.bf16.mxu0 0
  %75 = vmatpush1.bf16.msra.mxu0 %v52
  %76 = vmatprep.subr.bf16.mxu0 0
  %77 = vmatpush1.bf16.msra.mxu0 %v51
  %78 = vmatprep.subr.bf16.mxu0 0
  %79 = vmatpush1.bf16.msra.mxu0 %v50
  %80 = vmatprep.subr.bf16.mxu0 0
  %81 = vmatpush1.bf16.msra.mxu0 %v49
  %82 = vmatprep.subr.bf16.mxu0 0
  %83 = vmatpush2.bf16.msra.mxu0 0
  %84 = vmatprep.subr.bf16.mxu0 0
  %85 = vmatpush2.bf16.msra.mxu0 0
  %86 = vmatprep.subr.bf16.mxu0 0
  %87 = vmatpush2.bf16.msra.mxu0 0
  %88 = vmatprep.subr.bf16.mxu0 0
  %89 = vmatpush2.bf16.msra.mxu0 0
  %90 = vmatprep.subr.bf16.mxu0 0
  %91 = vmatpush2.bf16.msra.mxu0 0
  %92 = vmatprep.subr.bf16.mxu0 0
  %93 = vmatpush2.bf16.msra.mxu0 0
  %94 = vmatprep.subr.bf16.mxu0 0
  %95 = vmatpush2.bf16.msra.mxu0 0
  %96 = vmatprep.subr.bf16.mxu0 0
  %97 = vmatpush2.bf16.msra.mxu0 0
  %98 = vmatprep.mubr.bf16.mxu0 0
  %99 = vmatmul.mubr.bf16.gmra.mxu0 %v60
  %v100 = vpop.f32.mrf.mxu0
  %v101 = vadd.f32 %v29, %v100
  %v102 = vpop.f32.mrf.mxu0
  %v103 = vpop.f32.mrf.mxu0
  %v104 = vpop.f32.mrf.mxu0
  %105 = vdwg.mxu0
  %vm106 = vcmp.ge.f32.partialorder %v101, 0.0
  %v107 = vmul.f32 %v101, 0.1
  %v108 = vsel %vm106, %v101, %v107
  %109 = vst [vmem:[%s3] sm:$0xff] %v108
  // Predicated region
  $region14: #{multi_pc_aligned_forward.29} parent=0 // pred_check
    _
  $region15: #{multi_pc_aligned_forward.29} parent=0 // pred_check_branch
    %111 = sbr.rel (0) target = $region17
  $region16: #{multi_pc_aligned_forward.29} parent=0 // pred_region
    _
  $region17: #{multi_pc_aligned_forward.29} parent=0 // pred_fallthru
    _
  // Predicated region
  $region18: #{multi_pc_aligned_forward.29} parent=0 // pred_check
    _
  $region19: #{multi_pc_aligned_forward.29} parent=0 // pred_check_branch
    %113 = sbr.rel (0) target = $region21
  $region20: #{multi_pc_aligned_forward.29} parent=0 // pred_region
    _
  $region21: #{multi_pc_aligned_forward.29} parent=0 // pred_fallthru
    _

// kernel: multi_pc_aligned_forward.33
$region0: #{multi_pc_aligned_forward.33}
  #allocation0 [shape = 'u32[]', space=smem, size = 0x4, offset = 0x4, fixed_abs, tag = 'smem constant byte address 0x4 - core index']
  #allocation1 [shape = 'u32[144,128]{1,0:T(1,128)}', space=vmem, size = 0x12000, scoped, tag = 'internal scratch']
  %s0 = inlined_call_operand.vmem [shape: bf16[8,144], index: 0, kind: input, shape index: {}]
  %s1 = inlined_call_operand.vmem [shape: f32[8,1], index: 1, kind: input, shape index: {}]
  %s2 = inlined_call_operand.vmem [shape: bf16[144,128], index: 2, kind: input, shape index: {}]
  %s3 = inlined_call_operand.vmem [shape: f32[8,128], index: 3, kind: output, shape index: {}]
  %s4 = sld [smem:[#allocation0]]
  $region22: #{multi_pc_aligned_forward.33} parent=0
    _
  %s6 = ssub.s32 1, %s4
  %s7 = scalar_select 0, %s6, %s4
  // Predicated region
  $region2: #{multi_pc_aligned_forward.33} parent=0 // pred_check
    _
  $region3: #{multi_pc_aligned_forward.33} parent=0 // pred_check_branch
    %9 = sbr.rel (0) target = $region5
  $region4: #{multi_pc_aligned_forward.33} parent=0 // pred_region
    _
  $region5: #{multi_pc_aligned_forward.33} parent=0 // pred_fallthru
    _
  // Predicated region
  $region6: #{multi_pc_aligned_forward.33} parent=0 // pred_check
    _
  $region7: #{multi_pc_aligned_forward.33} parent=0 // pred_check_branch
    %11 = sbr.rel (0) target = $region9
  $region8: #{multi_pc_aligned_forward.33} parent=0 // pred_region
    _
  $region9: #{multi_pc_aligned_forward.33} parent=0 // pred_fallthru
    _
  // Predicated region
  $region10: #{multi_pc_aligned_forward.33} parent=0 // pred_check
    _
  $region11: #{multi_pc_aligned_forward.33} parent=0 // pred_check_branch
    %13 = sbr.rel (0) target = $region13
  $region12: #{multi_pc_aligned_forward.33} parent=0 // pred_region
    _
  $region13: #{multi_pc_aligned_forward.33} parent=0 // pred_fallthru
    _
  %v15 = vld [vmem:[%s0] sm:$0xff]
  %v16 = vld [vmem:[%s2] sm:$0xf]
  %v17 = vld [vmem:[%s2 + $0x4] sm:$0xf]
  %v18 = vld [vmem:[%s2 + $0x8] sm:$0xf]
  %v19 = vld [vmem:[%s2 + $0xc] sm:$0xf]
  %v20 = vld [vmem:[%s2 + $0x10] sm:$0xf]
  %v21 = vld [vmem:[%s2 + $0x14] sm:$0xf]
  %v22 = vld [vmem:[%s2 + $0x18] sm:$0xf]
  %v23 = vld [vmem:[%s2 + $0x1c] sm:$0xf]
  %v24 = vld [vmem:[%s2 + $0x20] sm:$0xf]
  %v25 = vld [vmem:[%s2 + $0x24] sm:$0xf]
  %v26 = vld [vmem:[%s2 + $0x28] sm:$0xf]
  %v27 = vld [vmem:[%s2 + $0x2c] sm:$0xf]
  %v28 = vld [vmem:[%s2 + $0x30] sm:$0xf]
  %v29 = vld [vmem:[%s2 + $0x34] sm:$0xf]
  %v30 = vld [vmem:[%s2 + $0x38] sm:$0xf]
  %v31 = vld [vmem:[%s2 + $0x3c] sm:$0xf]
  %v32 = vld [vmem:[%s2 + $0x40] sm:$0xf]
  %v33 = vld [vmem:[%s2 + $0x44] sm:$0xf]
  %v34 = vld [vmem:[%s1] sm:$0xff]
  %36 = vset.pattern.permute.xlu0 0
  %37 = vperm.xlu0 %36, %v34
  %v38 = vpop.permute.xlu0 %37
  %v41 = vunpack.c.l.b16 %v15
  %v42 = vunpack.c.h.b16 %v15
  %v43 = vpack.c.b16 %v41, %v41
  %v44 = vpack.c.b16 %v42, %v42
  %v64 = vunpack.c.l.b16 %v16
  %v65 = vunpack.c.l.b16 %v17
  %v66 = vunpack.c.l.b16 %v18
  %v67 = vunpack.c.l.b16 %v19
  %v68 = vunpack.c.l.b16 %v20
  %v69 = vunpack.c.l.b16 %v21
  %v70 = vunpack.c.l.b16 %v22
  %v71 = vunpack.c.l.b16 %v23
  %v72 = vunpack.c.l.b16 %v24
  %v73 = vunpack.c.l.b16 %v25
  %v74 = vunpack.c.l.b16 %v26
  %v75 = vunpack.c.l.b16 %v27
  %v76 = vunpack.c.l.b16 %v28
  %v77 = vunpack.c.l.b16 %v29
  %v78 = vunpack.c.l.b16 %v30
  %v79 = vunpack.c.l.b16 %v31
  %v80 = vunpack.c.l.b16 %v32
  %v81 = vunpack.c.l.b16 %v33
  %v82 = vpack.c.b16 %v65, %v64
  %v83 = vpack.c.b16 %v67, %v66
  %v84 = vpack.c.b16 %v69, %v68
  %v85 = vpack.c.b16 %v71, %v70
  %v86 = vpack.c.b16 %v73, %v72
  %v87 = vpack.c.b16 %v75, %v74
  %v88 = vpack.c.b16 %v77, %v76
  %v89 = vpack.c.b16 %v79, %v78
  %v90 = vpack.c.b16 %v81, %v80
  %vm100 = vcmask 130048
  %v102 = vsel %vm100, %v44, 0
  %104 = vmatprep.subr.bf16.mxu0 0
  %105 = vmatpush1.bf16.msra.mxu0 %v89
  %106 = vmatprep.subr.bf16.mxu0 0
  %107 = vmatpush1.bf16.msra.mxu0 %v88
  %108 = vmatprep.subr.bf16.mxu0 0
  %109 = vmatpush1.bf16.msra.mxu0 %v87
  %110 = vmatprep.subr.bf16.mxu0 0
  %111 = vmatpush1.bf16.msra.mxu0 %v86
  %112 = vmatprep.subr.bf16.mxu0 0
  %113 = vmatpush1.bf16.msra.mxu0 %v85
  %114 = vmatprep.subr.bf16.mxu0 0
  %115 = vmatpush1.bf16.msra.mxu0 %v84
  %116 = vmatprep.subr.bf16.mxu0 0
  %117 = vmatpush1.bf16.msra.mxu0 %v83
  %118 = vmatprep.subr.bf16.mxu0 0
  %119 = vmatpush1.bf16.msra.mxu0 %v82
  %120 = vmatprep.subr.bf16.mxu0 0
  %121 = vmatpush2.bf16.msra.mxu0 0
  %122 = vmatprep.subr.bf16.mxu0 0
  %123 = vmatpush2.bf16.msra.mxu0 0
  %124 = vmatprep.subr.bf16.mxu0 0
  %125 = vmatpush2.bf16.msra.mxu0 0
  %126 = vmatprep.subr.bf16.mxu0 0
  %127 = vmatpush2.bf16.msra.mxu0 0
  %128 = vmatprep.subr.bf16.mxu0 0
  %129 = vmatpush2.bf16.msra.mxu0 0
  %130 = vmatprep.subr.bf16.mxu0 0
  %131 = vmatpush2.bf16.msra.mxu0 0
  %132 = vmatprep.subr.bf16.mxu0 0
  %133 = vmatpush2.bf16.msra.mxu0 0
  %134 = vmatprep.subr.bf16.mxu0 0
  %135 = vmatpush2.bf16.msra.mxu0 %v90
  %136 = vmatprep.mubr.bf16.mxu0 %v102
  %137 = vmatmul.mubr.bf16.gmra.mxu0 %v43
  %v138 = vpop.f32.mrf.mxu0
  %v139 = vadd.f32 %v38, %v138
  %v140 = vpop.f32.mrf.mxu0
  %v141 = vpop.f32.mrf.mxu0
  %v142 = vpop.f32.mrf.mxu0
  %143 = vdwg.mxu0
  %vm144 = vcmp.ge.f32.partialorder %v139, 0.0
  %v145 = vmul.f32 %v139, 0.1
  %v146 = vsel %vm144, %v139, %v145
  %147 = vst [vmem:[%s3] sm:$0xff] %v146
  // Predicated region
  $region14: #{multi_pc_aligned_forward.33} parent=0 // pred_check
    _
  $region15: #{multi_pc_aligned_forward.33} parent=0 // pred_check_branch
    %149 = sbr.rel (0) target = $region17
  $region16: #{multi_pc_aligned_forward.33} parent=0 // pred_region
    _
  $region17: #{multi_pc_aligned_forward.33} parent=0 // pred_fallthru
    _
  // Predicated region
  $region18: #{multi_pc_aligned_forward.33} parent=0 // pred_check
    _
  $region19: #{multi_pc_aligned_forward.33} parent=0 // pred_check_branch
    %151 = sbr.rel (0) target = $region21
  $region20: #{multi_pc_aligned_forward.33} parent=0 // pred_region
    _
  $region21: #{multi_pc_aligned_forward.33} parent=0 // pred_fallthru
    _

// kernel: multi_pc_aligned_forward.37
$region0: #{multi_pc_aligned_forward.37}
  #allocation0 [shape = 'u32[]', space=smem, size = 0x4, offset = 0x4, fixed_abs, tag = 'smem constant byte address 0x4 - core index']
  #allocation1 [shape = 'u32[144,128]{1,0:T(1,128)}', space=vmem, size = 0x12000, scoped, tag = 'internal scratch']
  %s0 = inlined_call_operand.vmem [shape: bf16[216,72], index: 0, kind: input, shape index: {}]
  %s1 = inlined_call_operand.vmem [shape: f32[216,1], index: 1, kind: input, shape index: {}]
  %s2 = inlined_call_operand.vmem [shape: bf16[72,128], index: 2, kind: input, shape index: {}]
  %s3 = inlined_call_operand.vmem [shape: f32[216,128], index: 3, kind: output, shape index: {}]
  %s4 = sld [smem:[#allocation0]]
  $region22: #{multi_pc_aligned_forward.37} parent=0
    _
  %s6 = ssub.s32 1, %s4
  %s7 = scalar_select 0, %s6, %s4
  // Predicated region
  $region2: #{multi_pc_aligned_forward.37} parent=0 // pred_check
    _
  $region3: #{multi_pc_aligned_forward.37} parent=0 // pred_check_branch
    %9 = sbr.rel (0) target = $region5
  $region4: #{multi_pc_aligned_forward.37} parent=0 // pred_region
    _
  $region5: #{multi_pc_aligned_forward.37} parent=0 // pred_fallthru
    _
  // Predicated region
  $region6: #{multi_pc_aligned_forward.37} parent=0 // pred_check
    _
  $region7: #{multi_pc_aligned_forward.37} parent=0 // pred_check_branch
    %11 = sbr.rel (0) target = $region9
  $region8: #{multi_pc_aligned_forward.37} parent=0 // pred_region
    _
  $region9: #{multi_pc_aligned_forward.37} parent=0 // pred_fallthru
    _
  // Predicated region
  $region10: #{multi_pc_aligned_forward.37} parent=0 // pred_check
    _
  $region11: #{multi_pc_aligned_forward.37} parent=0 // pred_check_branch
    %13 = sbr.rel (0) target = $region13
  $region12: #{multi_pc_aligned_forward.37} parent=0 // pred_region
    _
  $region13: #{multi_pc_aligned_forward.37} parent=0 // pred_fallthru
    _
  %v15 = vld [vmem:[%s0] sm:$0xf]
  %v16 = vld [vmem:[%s0 + $0x4] sm:$0xf]
  %v17 = vld [vmem:[%s0 + $0x8] sm:$0xf]
  %v18 = vld [vmem:[%s0 + $0xc] sm:$0xf]
  %v19 = vld [vmem:[%s0 + $0x10] sm:$0xf]
  %v20 = vld [vmem:[%s0 + $0x14] sm:$0xf]
  %v21 = vld [vmem:[%s0 + $0x18] sm:$0xf]
  %v22 = vld [vmem:[%s0 + $0x1c] sm:$0xf]
  %v23 = vld [vmem:[%s0 + $0x20] sm:$0xf]
  %v24 = vld [vmem:[%s0 + $0x24] sm:$0xf]
  %v25 = vld [vmem:[%s0 + $0x28] sm:$0xf]
  %v26 = vld [vmem:[%s0 + $0x2c] sm:$0xf]
  %v27 = vld [vmem:[%s0 + $0x30] sm:$0xf]
  %v28 = vld [vmem:[%s0 + $0x34] sm:$0xf]
  %v29 = vld [vmem:[%s0 + $0x38] sm:$0xf]
  %v30 = vld [vmem:[%s0 + $0x3c] sm:$0xf]
  %v31 = vld [vmem:[%s0 + $0x40] sm:$0xf]
  %v32 = vld [vmem:[%s0 + $0x44] sm:$0xf]
  %v33 = vld [vmem:[%s0 + $0x48] sm:$0xf]
  %v34 = vld [vmem:[%s0 + $0x4c] sm:$0xf]
  %v35 = vld [vmem:[%s0 + $0x50] sm:$0xf]
  %v36 = vld [vmem:[%s0 + $0x54] sm:$0xf]
  %v37 = vld [vmem:[%s0 + $0x58] sm:$0xf]
  %v38 = vld [vmem:[%s0 + $0x5c] sm:$0xf]
  %v39 = vld [vmem:[%s0 + $0x60] sm:$0xf]
  %v40 = vld [vmem:[%s0 + $0x64] sm:$0xf]
  %v41 = vld [vmem:[%s0 + $0x68] sm:$0xf]
  %v42 = vld [vmem:[%s2] sm:$0xf]
  %v43 = vld [vmem:[%s2 + $0x4] sm:$0xf]
  %v44 = vld [vmem:[%s2 + $0x8] sm:$0xf]
  %v45 = vld [vmem:[%s2 + $0xc] sm:$0xf]
  %v46 = vld [vmem:[%s2 + $0x10] sm:$0xf]
  %v47 = vld [vmem:[%s2 + $0x14] sm:$0xf]
  %v48 = vld [vmem:[%s2 + $0x18] sm:$0xf]
  %v49 = vld [vmem:[%s2 + $0x1c] sm:$0xf]
  %v50 = vld [vmem:[%s2 + $0x20] sm:$0xf]
  %v51 = vld [vmem:[%s1] sm:$0xff]
  %v52 = vld [vmem:[%s1 + $0x8] sm:$0xff]
  %v53 = vld [vmem:[%s1 + $0x10] sm:$0xff]
  %v54 = vld [vmem:[%s1 + $0x18] sm:$0xff]
  %v55 = vld [vmem:[%s1 + $0x20] sm:$0xff]
  %v56 = vld [vmem:[%s1 + $0x28] sm:$0xff]
  %v57 = vld [vmem:[%s1 + $0x30] sm:$0xff]
  %v58 = vld [vmem:[%s1 + $0x38] sm:$0xff]
  %v59 = vld [vmem:[%s1 + $0x40] sm:$0xff]
  %v60 = vld [vmem:[%s1 + $0x48] sm:$0xff]
  %v61 = vld [vmem:[%s1 + $0x50] sm:$0xff]
  %v62 = vld [vmem:[%s1 + $0x58] sm:$0xff]
  %v63 = vld [vmem:[%s1 + $0x60] sm:$0xff]
  %v64 = vld [vmem:[%s1 + $0x68] sm:$0xff]
  %v65 = vld [vmem:[%s1 + $0x70] sm:$0xff]
  %v66 = vld [vmem:[%s1 + $0x78] sm:$0xff]
  %v67 = vld [vmem:[%s1 + $0x80] sm:$0xff]
  %v68 = vld [vmem:[%s1 + $0x88] sm:$0xff]
  %v69 = vld [vmem:[%s1 + $0x90] sm:$0xff]
  %v70 = vld [vmem:[%s1 + $0x98] sm:$0xff]
  %v71 = vld [vmem:[%s1 + $0xa0] sm:$0xff]
  %v72 = vld [vmem:[%s1 + $0xa8] sm:$0xff]
  %v73 = vld [vmem:[%s1 + $0xb0] sm:$0xff]
  %v74 = vld [vmem:[%s1 + $0xb8] sm:$0xff]
  %v75 = vld [vmem:[%s1 + $0xc0] sm:$0xff]
  %v76 = vld [vmem:[%s1 + $0xc8] sm:$0xff]
  %v77 = vld [vmem:[%s1 + $0xd0] sm:$0xff]
  %79 = vset.pattern.permute.xlu0 0
  %80 = vperm.xlu0 %79, %v51
  %v81 = vpop.permute.xlu0 %80
  %84 = vset.pattern.permute.xlu0 0
  %85 = vperm.xlu0 %84, %v52
  %v86 = vpop.permute.xlu0 %85
  %89 = vset.pattern.permute.xlu0 0
  %90 = vperm.xlu0 %89, %v53
  %v91 = vpop.permute.xlu0 %90
  %94 = vset.pattern.permute.xlu0 0
  %95 = vperm.xlu0 %94, %v54
  %v96 = vpop.permute.xlu0 %95
  %99 = vset.pattern.permute.xlu0 0
  %100 = vperm.xlu0 %99, %v55
  %v101 = vpop.permute.xlu0 %100
  %104 = vset.pattern.permute.xlu0 0
  %105 = vperm.xlu0 %104, %v56
  %v106 = vpop.permute.xlu0 %105
  %109 = vset.pattern.permute.xlu0 0
  %110 = vperm.xlu0 %109, %v57
  %v111 = vpop.permute.xlu0 %110
  %114 = vset.pattern.permute.xlu0 0
  %115 = vperm.xlu0 %114, %v58
  %v116 = vpop.permute.xlu0 %115
  %119 = vset.pattern.permute.xlu0 0
  %120 = vperm.xlu0 %119, %v59
  %v121 = vpop.permute.xlu0 %120
  %124 = vset.pattern.permute.xlu0 0
  %125 = vperm.xlu0 %124, %v60
  %v126 = vpop.permute.xlu0 %125
  %129 = vset.pattern.permute.xlu0 0
  %130 = vperm.xlu0 %129, %v61
  %v131 = vpop.permute.xlu0 %130
  %134 = vset.pattern.permute.xlu0 0
  %135 = vperm.xlu0 %134, %v62
  %v136 = vpop.permute.xlu0 %135
  %139 = vset.pattern.permute.xlu0 0
  %140 = vperm.xlu0 %139, %v63
  %v141 = vpop.permute.xlu0 %140
  %144 = vset.pattern.permute.xlu0 0
  %145 = vperm.xlu0 %144, %v64
  %v146 = vpop.permute.xlu0 %145
  %149 = vset.pattern.permute.xlu0 0
  %150 = vperm.xlu0 %149, %v65
  %v151 = vpop.permute.xlu0 %150
  %154 = vset.pattern.permute.xlu0 0
  %155 = vperm.xlu0 %154, %v66
  %v156 = vpop.permute.xlu0 %155
  %159 = vset.pattern.permute.xlu0 0
  %160 = vperm.xlu0 %159, %v67
  %v161 = vpop.permute.xlu0 %160
  %164 = vset.pattern.permute.xlu0 0
  %165 = vperm.xlu0 %164, %v68
  %v166 = vpop.permute.xlu0 %165
  %169 = vset.pattern.permute.xlu0 0
  %170 = vperm.xlu0 %169, %v69
  %v171 = vpop.permute.xlu0 %170
  %174 = vset.pattern.permute.xlu0 0
  %175 = vperm.xlu0 %174, %v70
  %v176 = vpop.permute.xlu0 %175
  %179 = vset.pattern.permute.xlu0 0
  %180 = vperm.xlu0 %179, %v71
  %v181 = vpop.permute.xlu0 %180
  %184 = vset.pattern.permute.xlu0 0
  %185 = vperm.xlu0 %184, %v72
  %v186 = vpop.permute.xlu0 %185
  %189 = vset.pattern.permute.xlu0 0
  %190 = vperm.xlu0 %189, %v73
  %v191 = vpop.permute.xlu0 %190
  %194 = vset.pattern.permute.xlu0 0
  %195 = vperm.xlu0 %194, %v74
  %v196 = vpop.permute.xlu0 %195
  %199 = vset.pattern.permute.xlu0 0
  %200 = vperm.xlu0 %199, %v75
  %v201 = vpop.permute.xlu0 %200
  %204 = vset.pattern.permute.xlu0 0
  %205 = vperm.xlu0 %204, %v76
  %v206 = vpop.permute.xlu0 %205
  %209 = vset.pattern.permute.xlu0 0
  %210 = vperm.xlu0 %209, %v77
  %v211 = vpop.permute.xlu0 %210
  %v240 = vunpack.c.l.b16 %v15
  %v241 = vunpack.c.l.b16 %v16
  %v242 = vunpack.c.l.b16 %v17
  %v243 = vunpack.c.l.b16 %v18
  %v244 = vunpack.c.l.b16 %v19
  %v245 = vunpack.c.l.b16 %v20
  %v246 = vunpack.c.l.b16 %v21
  %v247 = vunpack.c.l.b16 %v22
  %v248 = vunpack.c.l.b16 %v23
  %v249 = vunpack.c.l.b16 %v24
  %v250 = vunpack.c.l.b16 %v25
  %v251 = vunpack.c.l.b16 %v26
  %v252 = vunpack.c.l.b16 %v27
  %v253 = vunpack.c.l.b16 %v28
  %v254 = vunpack.c.l.b16 %v29
  %v255 = vunpack.c.l.b16 %v30
  %v256 = vunpack.c.l.b16 %v31
  %v257 = vunpack.c.l.b16 %v32
  %v258 = vunpack.c.l.b16 %v33
  %v259 = vunpack.c.l.b16 %v34
  %v260 = vunpack.c.l.b16 %v35
  %v261 = vunpack.c.l.b16 %v36
  %v262 = vunpack.c.l.b16 %v37
  %v263 = vunpack.c.l.b16 %v38
  %v264 = vunpack.c.l.b16 %v39
  %v265 = vunpack.c.l.b16 %v40
  %v266 = vunpack.c.l.b16 %v41
  %v267 = vpack.c.b16 %v241, %v240
  %v268 = vpack.c.b16 %v243, %v242
  %v269 = vpack.c.b16 %v245, %v244
  %v270 = vpack.c.b16 %v247, %v246
  %v271 = vpack.c.b16 %v249, %v248
  %v272 = vpack.c.b16 %v251, %v250
  %v273 = vpack.c.b16 %v253, %v252
  %v274 = vpack.c.b16 %v255, %v254
  %v275 = vpack.c.b16 %v257, %v256
  %v276 = vpack.c.b16 %v259, %v258
  %v277 = vpack.c.b16 %v261, %v260
  %v278 = vpack.c.b16 %v263, %v262
  %v279 = vpack.c.b16 %v265, %v264
  %v280 = vpack.c.b16 %v266, %v266
  %v290 = vunpack.c.l.b16 %v42
  %v291 = vunpack.c.l.b16 %v43
  %v292 = vunpack.c.l.b16 %v44
  %v293 = vunpack.c.l.b16 %v45
  %v294 = vunpack.c.l.b16 %v46
  %v295 = vunpack.c.l.b16 %v47
  %v296 = vunpack.c.l.b16 %v48
  %v297 = vunpack.c.l.b16 %v49
  %v298 = vunpack.c.l.b16 %v50
  %v299 = vpack.c.b16 %v291, %v290
  %v300 = vpack.c.b16 %v293, %v292
  %v301 = vpack.c.b16 %v295, %v294
  %v302 = vpack.c.b16 %v297, %v296
  %v303 = vpack.c.b16 %v298, %v298
  %vm308 = vcmask 588800
  %v310 = vsel %vm308, %v267, 0
  %v313 = vsel %vm308, %v268, 0
  %v316 = vsel %vm308, %v269, 0
  %v319 = vsel %vm308, %v270, 0
  %v322 = vsel %vm308, %v271, 0
  %v325 = vsel %vm308, %v272, 0
  %v328 = vsel %vm308, %v273, 0
  %v331 = vsel %vm308, %v274, 0
  %v334 = vsel %vm308, %v275, 0
  %v337 = vsel %vm308, %v276, 0
  %v340 = vsel %vm308, %v277, 0
  %v343 = vsel %vm308, %v278, 0
  %v346 = vsel %vm308, %v279, 0
  %v349 = vsel %vm308, %v280, 0
  %vm351 = vcmask 1043456
  %v353 = vsel %vm351, %v303, 0
  %355 = vmatprep.subr.bf16.mxu0 0
  %356 = vmatpush1.bf16.msra.mxu0 0
  %357 = vmatprep.subr.bf16.mxu0 0
  %358 = vmatpush1.bf16.msra.mxu0 0
  %359 = vmatprep.subr.bf16.mxu0 0
  %360 = vmatpush1.bf16.msra.mxu0 0
  %361 = vmatprep.subr.bf16.mxu0 0
  %362 = vmatpush1.bf16.msra.mxu0 %v353
  %363 = vmatprep.subr.bf16.mxu0 0
  %364 = vmatpush1.bf16.msra.mxu0 %v302
  %365 = vmatprep.subr.bf16.mxu0 0
  %366 = vmatpush1.bf16.msra.mxu0 %v301
  %367 = vmatprep.subr.bf16.mxu0 0
  %368 = vmatpush1.bf16.msra.mxu0 %v300
  %369 = vmatprep.subr.bf16.mxu0 0
  %370 = vmatpush1.bf16.msra.mxu0 %v299
  %371 = vmatprep.subr.bf16.mxu0 0
  %372 = vmatpush2.bf16.msra.mxu0 0
  %373 = vmatprep.subr.bf16.mxu0 0
  %374 = vmatpush2.bf16.msra.mxu0 0
  %375 = vmatprep.subr.bf16.mxu0 0
  %376 = vmatpush2.bf16.msra.mxu0 0
  %377 = vmatprep.subr.bf16.mxu0 0
  %378 = vmatpush2.bf16.msra.mxu0 0
  %379 = vmatprep.subr.bf16.mxu0 0
  %380 = vmatpush2.bf16.msra.mxu0 0
  %381 = vmatprep.subr.bf16.mxu0 0
  %382 = vmatpush2.bf16.msra.mxu0 0
  %383 = vmatprep.subr.bf16.mxu0 0
  %384 = vmatpush2.bf16.msra.mxu0 0
  %385 = vmatprep.subr.bf16.mxu0 0
  %386 = vmatpush2.bf16.msra.mxu0 0
  %387 = vmatprep.mubr.bf16.mxu0 0
  %388 = vmatmul.mubr.bf16.gmra.mxu0 %v310
  %v389 = vpop.f32.mrf.mxu0
  %v390 = vadd.f32 %v81, %v389
  %v391 = vpop.f32.mrf.mxu0
  %v392 = vpop.f32.mrf.mxu0
  %v393 = vadd.f32 %v86, %v392
  %v394 = vpop.f32.mrf.mxu0
  %395 = vmatprep.mubr.bf16.mxu0 0
  %396 = vmatmul.mubr.bf16.gmra.mxu0 %v313
  %v397 = vpop.f32.mrf.mxu0
  %v398 = vadd.f32 %v91, %v397
  %v399 = vpop.f32.mrf.mxu0
  %v400 = vpop.f32.mrf.mxu0
  %v401 = vadd.f32 %v96, %v400
  %v402 = vpop.f32.mrf.mxu0
  %403 = vmatprep.mubr.bf16.mxu0 0
  %404 = vmatmul.mubr.bf16.gmra.mxu0 %v316
  %v405 = vpop.f32.mrf.mxu0
  %v406 = vadd.f32 %v101, %v405
  %v407 = vpop.f32.mrf.mxu0
  %v408 = vpop.f32.mrf.mxu0
  %v409 = vadd.f32 %v106, %v408
  %v410 = vpop.f32.mrf.mxu0
  %411 = vmatprep.mubr.bf16.mxu0 0
  %412 = vmatmul.mubr.bf16.gmra.mxu0 %v319
  %v413 = vpop.f32.mrf.mxu0
  %v414 = vadd.f32 %v111, %v413
  %v415 = vpop.f32.mrf.mxu0
  %v416 = vpop.f32.mrf.mxu0
  %v417 = vadd.f32 %v116, %v416
  %v418 = vpop.f32.mrf.mxu0
  %419 = vmatprep.mubr.bf16.mxu0 0
  %420 = vmatmul.mubr.bf16.gmra.mxu0 %v322
  %v421 = vpop.f32.mrf.mxu0
  %v422 = vadd.f32 %v121, %v421
  %v423 = vpop.f32.mrf.mxu0
  %v424 = vpop.f32.mrf.mxu0
  %v425 = vadd.f32 %v126, %v424
  %v426 = vpop.f32.mrf.mxu0
  %427 = vmatprep.mubr.bf16.mxu0 0
  %428 = vmatmul.mubr.bf16.gmra.mxu0 %v325
  %v429 = vpop.f32.mrf.mxu0
  %v430 = vadd.f32 %v131, %v429
  %v431 = vpop.f32.mrf.mxu0
  %v432 = vpop.f32.mrf.mxu0
  %v433 = vadd.f32 %v136, %v432
  %v434 = vpop.f32.mrf.mxu0
  %435 = vmatprep.mubr.bf16.mxu0 0
  %436 = vmatmul.mubr.bf16.gmra.mxu0 %v328
  %v437 = vpop.f32.mrf.mxu0
  %v438 = vadd.f32 %v141, %v437
  %v439 = vpop.f32.mrf.mxu0
  %v440 = vpop.f32.mrf.mxu0
  %v441 = vadd.f32 %v146, %v440
  %v442 = vpop.f32.mrf.mxu0
  %443 = vmatprep.mubr.bf16.mxu0 0
  %444 = vmatmul.mubr.bf16.gmra.mxu0 %v331
  %v445 = vpop.f32.mrf.mxu0
  %v446 = vadd.f32 %v151, %v445
  %v447 = vpop.f32.mrf.mxu0
  %v448 = vpop.f32.mrf.mxu0
  %v449 = vadd.f32 %v156, %v448
  %v450 = vpop.f32.mrf.mxu0
  %451 = vmatprep.mubr.bf16.mxu0 0
  %452 = vmatmul.mubr.bf16.gmra.mxu0 %v334
  %v453 = vpop.f32.mrf.mxu0
  %v454 = vadd.f32 %v161, %v453
  %v455 = vpop.f32.mrf.mxu0
  %v456 = vpop.f32.mrf.mxu0
  %v457 = vadd.f32 %v166, %v456
  %v458 = vpop.f32.mrf.mxu0
  %459 = vmatprep.mubr.bf16.mxu0 0
  %460 = vmatmul.mubr.bf16.gmra.mxu0 %v337
  %v461 = vpop.f32.mrf.mxu0
  %v462 = vadd.f32 %v171, %v461
  %v463 = vpop.f32.mrf.mxu0
  %v464 = vpop.f32.mrf.mxu0
  %v465 = vadd.f32 %v176, %v464
  %v466 = vpop.f32.mrf.mxu0
  %467 = vmatprep.mubr.bf16.mxu0 0
  %468 = vmatmul.mubr.bf16.gmra.mxu0 %v340
  %v469 = vpop.f32.mrf.mxu0
  %v470 = vadd.f32 %v181, %v469
  %v471 = vpop.f32.mrf.mxu0
  %v472 = vpop.f32.mrf.mxu0
  %v473 = vadd.f32 %v186, %v472
  %v474 = vpop.f32.mrf.mxu0
  %475 = vmatprep.mubr.bf16.mxu0 0
  %476 = vmatmul.mubr.bf16.gmra.mxu0 %v343
  %v477 = vpop.f32.mrf.mxu0
  %v478 = vadd.f32 %v191, %v477
  %v479 = vpop.f32.mrf.mxu0
  %v480 = vpop.f32.mrf.mxu0
  %v481 = vadd.f32 %v196, %v480
  %v482 = vpop.f32.mrf.mxu0
  %483 = vmatprep.mubr.bf16.mxu0 0
  %484 = vmatmul.mubr.bf16.gmra.mxu0 %v346
  %v485 = vpop.f32.mrf.mxu0
  %v486 = vadd.f32 %v201, %v485
  %v487 = vpop.f32.mrf.mxu0
  %v488 = vpop.f32.mrf.mxu0
  %v489 = vadd.f32 %v206, %v488
  %v490 = vpop.f32.mrf.mxu0
  %491 = vmatprep.mubr.bf16.mxu0 0
  %492 = vmatmul.mubr.bf16.gmra.mxu0 %v349
  %v493 = vpop.f32.mrf.mxu0
  %v494 = vadd.f32 %v211, %v493
  %v495 = vpop.f32.mrf.mxu0
  %v496 = vpop.f32.mrf.mxu0
  %v497 = vpop.f32.mrf.mxu0
  %498 = vdwg.mxu0
  %499 = vst [vmem:[%s3] sm:$0xff] %v390
  %500 = vst [vmem:[%s3 + $0x8] sm:$0xff] %v393
  %501 = vst [vmem:[%s3 + $0x10] sm:$0xff] %v398
  %502 = vst [vmem:[%s3 + $0x18] sm:$0xff] %v401
  %503 = vst [vmem:[%s3 + $0x20] sm:$0xff] %v406
  %504 = vst [vmem:[%s3 + $0x28] sm:$0xff] %v409
  %505 = vst [vmem:[%s3 + $0x30] sm:$0xff] %v414
  %506 = vst [vmem:[%s3 + $0x38] sm:$0xff] %v417
  %507 = vst [vmem:[%s3 + $0x40] sm:$0xff] %v422
  %508 = vst [vmem:[%s3 + $0x48] sm:$0xff] %v425
  %509 = vst [vmem:[%s3 + $0x50] sm:$0xff] %v430
  %510 = vst [vmem:[%s3 + $0x58] sm:$0xff] %v433
  %511 = vst [vmem:[%s3 + $0x60] sm:$0xff] %v438
  %512 = vst [vmem:[%s3 + $0x68] sm:$0xff] %v441
  %513 = vst [vmem:[%s3 + $0x70] sm:$0xff] %v446
  %514 = vst [vmem:[%s3 + $0x78] sm:$0xff] %v449
  %515 = vst [vmem:[%s3 + $0x80] sm:$0xff] %v454
  %516 = vst [vmem:[%s3 + $0x88] sm:$0xff] %v457
  %517 = vst [vmem:[%s3 + $0x90] sm:$0xff] %v462
  %518 = vst [vmem:[%s3 + $0x98] sm:$0xff] %v465
  %519 = vst [vmem:[%s3 + $0xa0] sm:$0xff] %v470
  %520 = vst [vmem:[%s3 + $0xa8] sm:$0xff] %v473
  %521 = vst [vmem:[%s3 + $0xb0] sm:$0xff] %v478
  %522 = vst [vmem:[%s3 + $0xb8] sm:$0xff] %v481
  %523 = vst [vmem:[%s3 + $0xc0] sm:$0xff] %v486
  %524 = vst [vmem:[%s3 + $0xc8] sm:$0xff] %v489
  %525 = vst [vmem:[%s3 + $0xd0] sm:$0xff] %v494
  // Predicated region
  $region14: #{multi_pc_aligned_forward.37} parent=0 // pred_check
    _
  $region15: #{multi_pc_aligned_forward.37} parent=0 // pred_check_branch
    %527 = sbr.rel (0) target = $region17
  $region16: #{multi_pc_aligned_forward.37} parent=0 // pred_region
    _
  $region17: #{multi_pc_aligned_forward.37} parent=0 // pred_fallthru
    _
  // Predicated region
  $region18: #{multi_pc_aligned_forward.37} parent=0 // pred_check
    _
  $region19: #{multi_pc_aligned_forward.37} parent=0 // pred_check_branch
    %529 = sbr.rel (0) target = $region21
  $region20: #{multi_pc_aligned_forward.37} parent=0 // pred_region
    _
  $region21: #{multi_pc_aligned_forward.37} parent=0 // pred_fallthru
    _

// kernel: multi_pc_aligned_forward.38
$region0: #{multi_pc_aligned_forward.38}
  #allocation0 [shape = 'u32[]', space=smem, size = 0x4, offset = 0x4, fixed_abs, tag = 'smem constant byte address 0x4 - core index']
  #allocation1 [shape = 'u32[144,128]{1,0:T(1,128)}', space=vmem, size = 0x12000, scoped, tag = 'internal scratch']
  %s0 = inlined_call_operand.vmem [shape: bf16[8,72], index: 0, kind: input, shape index: {}]
  %s1 = inlined_call_operand.vmem [shape: f32[8,1], index: 1, kind: input, shape index: {}]
  %s2 = inlined_call_operand.vmem [shape: bf16[72,128], index: 2, kind: input, shape index: {}]
  %s3 = inlined_call_operand.vmem [shape: f32[8,128], index: 3, kind: output, shape index: {}]
  %s4 = sld [smem:[#allocation0]]
  $region22: #{multi_pc_aligned_forward.38} parent=0
    _
  %s6 = ssub.s32 1, %s4
  %s7 = scalar_select 0, %s6, %s4
  // Predicated region
  $region2: #{multi_pc_aligned_forward.38} parent=0 // pred_check
    _
  $region3: #{multi_pc_aligned_forward.38} parent=0 // pred_check_branch
    %9 = sbr.rel (0) target = $region5
  $region4: #{multi_pc_aligned_forward.38} parent=0 // pred_region
    _
  $region5: #{multi_pc_aligned_forward.38} parent=0 // pred_fallthru
    _
  // Predicated region
  $region6: #{multi_pc_aligned_forward.38} parent=0 // pred_check
    _
  $region7: #{multi_pc_aligned_forward.38} parent=0 // pred_check_branch
    %11 = sbr.rel (0) target = $region9
  $region8: #{multi_pc_aligned_forward.38} parent=0 // pred_region
    _
  $region9: #{multi_pc_aligned_forward.38} parent=0 // pred_fallthru
    _
  // Predicated region
  $region10: #{multi_pc_aligned_forward.38} parent=0 // pred_check
    _
  $region11: #{multi_pc_aligned_forward.38} parent=0 // pred_check_branch
    %13 = sbr.rel (0) target = $region13
  $region12: #{multi_pc_aligned_forward.38} parent=0 // pred_region
    _
  $region13: #{multi_pc_aligned_forward.38} parent=0 // pred_fallthru
    _
  %v15 = vld [vmem:[%s0] sm:$0xf]
  %v16 = vld [vmem:[%s2] sm:$0xf]
  %v17 = vld [vmem:[%s2 + $0x4] sm:$0xf]
  %v18 = vld [vmem:[%s2 + $0x8] sm:$0xf]
  %v19 = vld [vmem:[%s2 + $0xc] sm:$0xf]
  %v20 = vld [vmem:[%s2 + $0x10] sm:$0xf]
  %v21 = vld [vmem:[%s2 + $0x14] sm:$0xf]
  %v22 = vld [vmem:[%s2 + $0x18] sm:$0xf]
  %v23 = vld [vmem:[%s2 + $0x1c] sm:$0xf]
  %v24 = vld [vmem:[%s2 + $0x20] sm:$0xf]
  %v25 = vld [vmem:[%s1] sm:$0xff]
  %27 = vset.pattern.permute.xlu0 0
  %28 = vperm.xlu0 %27, %v25
  %v29 = vpop.permute.xlu0 %28
  %v40 = vunpack.c.l.b16 %v16
  %v41 = vunpack.c.l.b16 %v17
  %v42 = vunpack.c.l.b16 %v18
  %v43 = vunpack.c.l.b16 %v19
  %v44 = vunpack.c.l.b16 %v20
  %v45 = vunpack.c.l.b16 %v21
  %v46 = vunpack.c.l.b16 %v22
  %v47 = vunpack.c.l.b16 %v23
  %v48 = vunpack.c.l.b16 %v24
  %v49 = vpack.c.b16 %v41, %v40
  %v50 = vpack.c.b16 %v43, %v42
  %v51 = vpack.c.b16 %v45, %v44
  %v52 = vpack.c.b16 %v47, %v46
  %v53 = vpack.c.b16 %v48, %v48
  %vm58 = vcmask 588800
  %v60 = vsel %vm58, %v15, 0
  %vm62 = vcmask 1043456
  %v64 = vsel %vm62, %v53, 0
  %66 = vmatprep.subr.bf16.mxu0 0
  %67 = vmatpush1.bf16.msra.mxu0 0
  %68 = vmatprep.subr.bf16.mxu0 0
  %69 = vmatpush1.bf16.msra.mxu0 0
  %70 = vmatprep.subr.bf16.mxu0 0
  %71 = vmatpush1.bf16.msra.mxu0 0
  %72 = vmatprep.subr.bf16.mxu0 0
  %73 = vmatpush1.bf16.msra.mxu0 %v64
  %74 = vmatprep.subr.bf16.mxu0 0
  %75 = vmatpush1.bf16.msra.mxu0 %v52
  %76 = vmatprep.subr.bf16.mxu0 0
  %77 = vmatpush1.bf16.msra.mxu0 %v51
  %78 = vmatprep.subr.bf16.mxu0 0
  %79 = vmatpush1.bf16.msra.mxu0 %v50
  %80 = vmatprep.subr.bf16.mxu0 0
  %81 = vmatpush1.bf16.msra.mxu0 %v49
  %82 = vmatprep.subr.bf16.mxu0 0
  %83 = vmatpush2.bf16.msra.mxu0 0
  %84 = vmatprep.subr.bf16.mxu0 0
  %85 = vmatpush2.bf16.msra.mxu0 0
  %86 = vmatprep.subr.bf16.mxu0 0
  %87 = vmatpush2.bf16.msra.mxu0 0
  %88 = vmatprep.subr.bf16.mxu0 0
  %89 = vmatpush2.bf16.msra.mxu0 0
  %90 = vmatprep.subr.bf16.mxu0 0
  %91 = vmatpush2.bf16.msra.mxu0 0
  %92 = vmatprep.subr.bf16.mxu0 0
  %93 = vmatpush2.bf16.msra.mxu0 0
  %94 = vmatprep.subr.bf16.mxu0 0
  %95 = vmatpush2.bf16.msra.mxu0 0
  %96 = vmatprep.subr.bf16.mxu0 0
  %97 = vmatpush2.bf16.msra.mxu0 0
  %98 = vmatprep.mubr.bf16.mxu0 0
  %99 = vmatmul.mubr.bf16.gmra.mxu0 %v60
  %v100 = vpop.f32.mrf.mxu0
  %v101 = vadd.f32 %v29, %v100
  %v102 = vpop.f32.mrf.mxu0
  %v103 = vpop.f32.mrf.mxu0
  %v104 = vpop.f32.mrf.mxu0
  %105 = vdwg.mxu0
  %106 = vst [vmem:[%s3] sm:$0xff] %v101
  // Predicated region
  $region14: #{multi_pc_aligned_forward.38} parent=0 // pred_check
    _
  $region15: #{multi_pc_aligned_forward.38} parent=0 // pred_check_branch
    %108 = sbr.rel (0) target = $region17
  $region16: #{multi_pc_aligned_forward.38} parent=0 // pred_region
    _
  $region17: #{multi_pc_aligned_forward.38} parent=0 // pred_fallthru
    _
  // Predicated region
  $region18: #{multi_pc_aligned_forward.38} parent=0 // pred_check
    _
  $region19: #{multi_pc_aligned_forward.38} parent=0 // pred_check_branch
    %110 = sbr.rel (0) target = $region21
  $region20: #{multi_pc_aligned_forward.38} parent=0 // pred_region
    _
  $region21: #{multi_pc_aligned_forward.38} parent=0 // pred_fallthru
    _

// kernel: multi_pc_aligned_forward.49
$region0: #{multi_pc_aligned_forward.49}
  #allocation0 [shape = 'u32[]', space=smem, size = 0x4, offset = 0x4, fixed_abs, tag = 'smem constant byte address 0x4 - core index']
  #allocation1 [shape = 'u32[144,128]{1,0:T(1,128)}', space=vmem, size = 0x12000, scoped, tag = 'internal scratch']
  %s0 = inlined_call_operand.vmem [shape: bf16[8,144], index: 0, kind: input, shape index: {}]
  %s1 = inlined_call_operand.vmem [shape: f32[8,1], index: 1, kind: input, shape index: {}]
  %s2 = inlined_call_operand.vmem [shape: bf16[144,512], index: 2, kind: input, shape index: {}]
  %s3 = inlined_call_operand.vmem [shape: f32[8,512], index: 3, kind: output, shape index: {}]
  %s4 = sld [smem:[#allocation0]]
  $region22: #{multi_pc_aligned_forward.49} parent=0
    _
  %s6 = ssub.s32 1, %s4
  %s7 = scalar_select 0, %s6, %s4
  // Predicated region
  $region2: #{multi_pc_aligned_forward.49} parent=0 // pred_check
    _
  $region3: #{multi_pc_aligned_forward.49} parent=0 // pred_check_branch
    %9 = sbr.rel (0) target = $region5
  $region4: #{multi_pc_aligned_forward.49} parent=0 // pred_region
    _
  $region5: #{multi_pc_aligned_forward.49} parent=0 // pred_fallthru
    _
  // Predicated region
  $region6: #{multi_pc_aligned_forward.49} parent=0 // pred_check
    _
  $region7: #{multi_pc_aligned_forward.49} parent=0 // pred_check_branch
    %11 = sbr.rel (0) target = $region9
  $region8: #{multi_pc_aligned_forward.49} parent=0 // pred_region
    _
  $region9: #{multi_pc_aligned_forward.49} parent=0 // pred_fallthru
    _
  // Predicated region
  $region10: #{multi_pc_aligned_forward.49} parent=0 // pred_check
    _
  $region11: #{multi_pc_aligned_forward.49} parent=0 // pred_check_branch
    %13 = sbr.rel (0) target = $region13
  $region12: #{multi_pc_aligned_forward.49} parent=0 // pred_region
    _
  $region13: #{multi_pc_aligned_forward.49} parent=0 // pred_fallthru
    _
  %v15 = vld [vmem:[%s0] sm:$0xff]
  %v16 = vld [vmem:[%s2] sm:$0xff]
  %v17 = vld [vmem:[%s2 + $0x8] sm:$0xff]
  %v18 = vld [vmem:[%s2 + $0x10] sm:$0xff]
  %v19 = vld [vmem:[%s2 + $0x18] sm:$0xff]
  %v20 = vld [vmem:[%s2 + $0x20] sm:$0xff]
  %v21 = vld [vmem:[%s2 + $0x28] sm:$0xff]
  %v22 = vld [vmem:[%s2 + $0x30] sm:$0xff]
  %v23 = vld [vmem:[%s2 + $0x38] sm:$0xff]
  %v24 = vld [vmem:[%s2 + $0x40] sm:$0xff]
  %v25 = vld [vmem:[%s2 + $0x48] sm:$0xff]
  %v26 = vld [vmem:[%s2 + $0x50] sm:$0xff]
  %v27 = vld [vmem:[%s2 + $0x58] sm:$0xff]
  %v28 = vld [vmem:[%s2 + $0x60] sm:$0xff]
  %v29 = vld [vmem:[%s2 + $0x68] sm:$0xff]
  %v30 = vld [vmem:[%s2 + $0x70] sm:$0xff]
  %v31 = vld [vmem:[%s2 + $0x78] sm:$0xff]
  %v32 = vld [vmem:[%s2 + $0x80] sm:$0xff]
  %v33 = vld [vmem:[%s2 + $0x88] sm:$0xff]
  %v34 = vld [vmem:[%s2 + $0x90] sm:$0xff]
  %v35 = vld [vmem:[%s2 + $0x98] sm:$0xff]
  %v36 = vld [vmem:[%s2 + $0xa0] sm:$0xff]
  %v37 = vld [vmem:[%s2 + $0xa8] sm:$0xff]
  %v38 = vld [vmem:[%s2 + $0xb0] sm:$0xff]
  %v39 = vld [vmem:[%s2 + $0xb8] sm:$0xff]
  %v40 = vld [vmem:[%s2 + $0xc0] sm:$0xff]
  %v41 = vld [vmem:[%s2 + $0xc8] sm:$0xff]
  %v42 = vld [vmem:[%s2 + $0xd0] sm:$0xff]
  %v43 = vld [vmem:[%s2 + $0xd8] sm:$0xff]
  %v44 = vld [vmem:[%s2 + $0xe0] sm:$0xff]
  %v45 = vld [vmem:[%s2 + $0xe8] sm:$0xff]
  %v46 = vld [vmem:[%s2 + $0xf0] sm:$0xff]
  %v47 = vld [vmem:[%s2 + $0xf8] sm:$0xff]
  %v48 = vld [vmem:[%s2 + $0x100] sm:$0xff]
  %v49 = vld [vmem:[%s2 + $0x108] sm:$0xff]
  %v50 = vld [vmem:[%s2 + $0x110] sm:$0xff]
  %v51 = vld [vmem:[%s2 + $0x118] sm:$0xff]
  %v52 = vld [vmem:[%s1] sm:$0xff]
  %54 = vset.pattern.permute.xlu0 0
  %55 = vperm.xlu0 %54, %v52
  %v56 = vpop.permute.xlu0 %55
  %v59 = vunpack.c.l.b16 %v15
  %v60 = vunpack.c.h.b16 %v15
  %v61 = vpack.c.b16 %v59, %v59
  %v62 = vpack.c.b16 %v60, %v60
  %v100 = vunpack.c.l.b16 %v16
  %v101 = vunpack.c.h.b16 %v16
  %v102 = vunpack.c.l.b16 %v17
  %v103 = vunpack.c.h.b16 %v17
  %v104 = vunpack.c.l.b16 %v18
  %v105 = vunpack.c.h.b16 %v18
  %v106 = vunpack.c.l.b16 %v19
  %v107 = vunpack.c.h.b16 %v19
  %v108 = vunpack.c.l.b16 %v20
  %v109 = vunpack.c.h.b16 %v20
  %v110 = vunpack.c.l.b16 %v21
  %v111 = vunpack.c.h.b16 %v21
  %v112 = vunpack.c.l.b16 %v22
  %v113 = vunpack.c.h.b16 %v22
  %v114 = vunpack.c.l.b16 %v23
  %v115 = vunpack.c.h.b16 %v23
  %v116 = vunpack.c.l.b16 %v24
  %v117 = vunpack.c.h.b16 %v24
  %v118 = vunpack.c.l.b16 %v25
  %v119 = vunpack.c.h.b16 %v25
  %v120 = vunpack.c.l.b16 %v26
  %v121 = vunpack.c.h.b16 %v26
  %v122 = vunpack.c.l.b16 %v27
  %v123 = vunpack.c.h.b16 %v27
  %v124 = vunpack.c.l.b16 %v28
  %v125 = vunpack.c.h.b16 %v28
  %v126 = vunpack.c.l.b16 %v29
  %v127 = vunpack.c.h.b16 %v29
  %v128 = vunpack.c.l.b16 %v30
  %v129 = vunpack.c.h.b16 %v30
  %v130 = vunpack.c.l.b16 %v31
  %v131 = vunpack.c.h.b16 %v31
  %v132 = vunpack.c.l.b16 %v32
  %v133 = vunpack.c.h.b16 %v32
  %v134 = vunpack.c.l.b16 %v33
  %v135 = vunpack.c.h.b16 %v33
  %v136 = vunpack.c.l.b16 %v34
  %v137 = vunpack.c.h.b16 %v34
  %v138 = vunpack.c.l.b16 %v35
  %v139 = vunpack.c.h.b16 %v35
  %v140 = vunpack.c.l.b16 %v36
  %v141 = vunpack.c.h.b16 %v36
  %v142 = vunpack.c.l.b16 %v37
  %v143 = vunpack.c.h.b16 %v37
  %v144 = vunpack.c.l.b16 %v38
  %v145 = vunpack.c.h.b16 %v38
  %v146 = vunpack.c.l.b16 %v39
  %v147 = vunpack.c.h.b16 %v39
  %v148 = vunpack.c.l.b16 %v40
  %v149 = vunpack.c.h.b16 %v40
  %v150 = vunpack.c.l.b16 %v41
  %v151 = vunpack.c.h.b16 %v41
  %v152 = vunpack.c.l.b16 %v42
  %v153 = vunpack.c.h.b16 %v42
  %v154 = vunpack.c.l.b16 %v43
  %v155 = vunpack.c.h.b16 %v43
  %v156 = vunpack.c.l.b16 %v44
  %v157 = vunpack.c.h.b16 %v44
  %v158 = vunpack.c.l.b16 %v45
  %v159 = vunpack.c.h.b16 %v45
  %v160 = vunpack.c.l.b16 %v46
  %v161 = vunpack.c.h.b16 %v46
  %v162 = vunpack.c.l.b16 %v47
  %v163 = vunpack.c.h.b16 %v47
  %v164 = vunpack.c.l.b16 %v48
  %v165 = vunpack.c.h.b16 %v48
  %v166 = vunpack.c.l.b16 %v49
  %v167 = vunpack.c.h.b16 %v49
  %v168 = vunpack.c.l.b16 %v50
  %v169 = vunpack.c.h.b16 %v50
  %v170 = vunpack.c.l.b16 %v51
  %v171 = vunpack.c.h.b16 %v51
  %v172 = vpack.c.b16 %v104, %v100
  %v173 = vpack.c.b16 %v105, %v101
  %v174 = vpack.c.b16 %v106, %v102
  %v175 = vpack.c.b16 %v107, %v103
  %v176 = vpack.c.b16 %v112, %v108
  %v177 = vpack.c.b16 %v113, %v109
  %v178 = vpack.c.b16 %v114, %v110
  %v179 = vpack.c.b16 %v115, %v111
  %v180 = vpack.c.b16 %v120, %v116
  %v181 = vpack.c.b16 %v121, %v117
  %v182 = vpack.c.b16 %v122, %v118
  %v183 = vpack.c.b16 %v123, %v119
  %v184 = vpack.c.b16 %v128, %v124
  %v185 = vpack.c.b16 %v129, %v125
  %v186 = vpack.c.b16 %v130, %v126
  %v187 = vpack.c.b16 %v131, %v127
  %v188 = vpack.c.b16 %v136, %v132
  %v189 = vpack.c.b16 %v137, %v133
  %v190 = vpack.c.b16 %v138, %v134
  %v191 = vpack.c.b16 %v139, %v135
  %v192 = vpack.c.b16 %v144, %v140
  %v193 = vpack.c.b16 %v145, %v141
  %v194 = vpack.c.b16 %v146, %v142
  %v195 = vpack.c.b16 %v147, %v143
  %v196 = vpack.c.b16 %v152, %v148
  %v197 = vpack.c.b16 %v153, %v149
  %v198 = vpack.c.b16 %v154, %v150
  %v199 = vpack.c.b16 %v155, %v151
  %v200 = vpack.c.b16 %v160, %v156
  %v201 = vpack.c.b16 %v161, %v157
  %v202 = vpack.c.b16 %v162, %v158
  %v203 = vpack.c.b16 %v163, %v159
  %v204 = vpack.c.b16 %v168, %v164
  %v205 = vpack.c.b16 %v169, %v165
  %v206 = vpack.c.b16 %v170, %v166
  %v207 = vpack.c.b16 %v171, %v167
  %vm244 = vcmask 130048
  %v246 = vsel %vm244, %v62, 0
  %248 = vmatprep.subr.bf16.mxu0 %v201
  %249 = vmatpush1.bf16.msra.mxu0 %v200
  %250 = vmatprep.subr.bf16.mxu0 %v197
  %251 = vmatpush1.bf16.msra.mxu0 %v196
  %252 = vmatprep.subr.bf16.mxu0 %v193
  %253 = vmatpush1.bf16.msra.mxu0 %v192
  %254 = vmatprep.subr.bf16.mxu0 %v189
  %255 = vmatpush1.bf16.msra.mxu0 %v188
  %256 = vmatprep.subr.bf16.mxu0 %v185
  %257 = vmatpush1.bf16.msra.mxu0 %v184
  %258 = vmatprep.subr.bf16.mxu0 %v181
  %259 = vmatpush1.bf16.msra.mxu0 %v180
  %260 = vmatprep.subr.bf16.mxu0 %v177
  %261 = vmatpush1.bf16.msra.mxu0 %v176
  %262 = vmatprep.subr.bf16.mxu0 %v173
  %263 = vmatpush1.bf16.msra.mxu0 %v172
  %264 = vmatprep.subr.bf16.mxu0 0
  %265 = vmatpush2.bf16.msra.mxu0 0
  %266 = vmatprep.subr.bf16.mxu0 0
  %267 = vmatpush2.bf16.msra.mxu0 0
  %268 = vmatprep.subr.bf16.mxu0 0
  %269 = vmatpush2.bf16.msra.mxu0 0
  %270 = vmatprep.subr.bf16.mxu0 0
  %271 = vmatpush2.bf16.msra.mxu0 0
  %272 = vmatprep.subr.bf16.mxu0 0
  %273 = vmatpush2.bf16.msra.mxu0 0
  %274 = vmatprep.subr.bf16.mxu0 0
  %275 = vmatpush2.bf16.msra.mxu0 0
  %276 = vmatprep.subr.bf16.mxu0 0
  %277 = vmatpush2.bf16.msra.mxu0 0
  %278 = vmatprep.subr.bf16.mxu0 %v205
  %279 = vmatpush2.bf16.msra.mxu0 %v204
  %280 = vmatprep.mubr.bf16.mxu0 %v246
  %281 = vmatmul.mubr.bf16.gmra.mxu0 %v61
  %v282 = vpop.f32.mrf.mxu0
  %v283 = vadd.f32 %v56, %v282
  %v284 = vpop.f32.mrf.mxu0
  %v285 = vadd.f32 %v56, %v284
  %v286 = vpop.f32.mrf.mxu0
  %v287 = vpop.f32.mrf.mxu0
  %288 = vdwg.mxu0
  %289 = vmatprep.subr.bf16.mxu0 %v203
  %290 = vmatpush1.bf16.msra.mxu0 %v202
  %291 = vmatprep.subr.bf16.mxu0 %v199
  %292 = vmatpush1.bf16.msra.mxu0 %v198
  %293 = vmatprep.subr.bf16.mxu0 %v195
  %294 = vmatpush1.bf16.msra.mxu0 %v194
  %295 = vmatprep.subr.bf16.mxu0 %v191
  %296 = vmatpush1.bf16.msra.mxu0 %v190
  %297 = vmatprep.subr.bf16.mxu0 %v187
  %298 = vmatpush1.bf16.msra.mxu0 %v186
  %299 = vmatprep.subr.bf16.mxu0 %v183
  %300 = vmatpush1.bf16.msra.mxu0 %v182
  %301 = vmatprep.subr.bf16.mxu0 %v179
  %302 = vmatpush1.bf16.msra.mxu0 %v178
  %303 = vmatprep.subr.bf16.mxu0 %v175
  %304 = vmatpush1.bf16.msra.mxu0 %v174
  %305 = vmatprep.subr.bf16.mxu0 0
  %306 = vmatpush2.bf16.msra.mxu0 0
  %307 = vmatprep.subr.bf16.mxu0 0
  %308 = vmatpush2.bf16.msra.mxu0 0
  %309 = vmatprep.subr.bf16.mxu0 0
  %310 = vmatpush2.bf16.msra.mxu0 0
  %311 = vmatprep.subr.bf16.mxu0 0
  %312 = vmatpush2.bf16.msra.mxu0 0
  %313 = vmatprep.subr.bf16.mxu0 0
  %314 = vmatpush2.bf16.msra.mxu0 0
  %315 = vmatprep.subr.bf16.mxu0 0
  %316 = vmatpush2.bf16.msra.mxu0 0
  %317 = vmatprep.subr.bf16.mxu0 0
  %318 = vmatpush2.bf16.msra.mxu0 0
  %319 = vmatprep.subr.bf16.mxu0 %v207
  %320 = vmatpush2.bf16.msra.mxu0 %v206
  %321 = vmatprep.mubr.bf16.mxu0 %v246
  %322 = vmatmul.mubr.bf16.gmra.mxu0 %v61
  %v323 = vpop.f32.mrf.mxu0
  %v324 = vadd.f32 %v56, %v323
  %v325 = vpop.f32.mrf.mxu0
  %v326 = vadd.f32 %v56, %v325
  %v327 = vpop.f32.mrf.mxu0
  %v328 = vpop.f32.mrf.mxu0
  %329 = vdwg.mxu0
  %vm330 = vcmp.ge.f32.partialorder %v283, 0.0
  %vm331 = vcmp.ge.f32.partialorder %v285, 0.0
  %vm332 = vcmp.ge.f32.partialorder %v324, 0.0
  %vm333 = vcmp.ge.f32.partialorder %v326, 0.0
  %v334 = vmul.f32 %v283, 0.1
  %v335 = vmul.f32 %v285, 0.1
  %v336 = vmul.f32 %v324, 0.1
  %v337 = vmul.f32 %v326, 0.1
  %v338 = vsel %vm330, %v283, %v334
  %v339 = vsel %vm331, %v285, %v335
  %v340 = vsel %vm332, %v324, %v336
  %v341 = vsel %vm333, %v326, %v337
  %342 = vst [vmem:[%s3] sm:$0xff] %v338
  %343 = vst [vmem:[%s3 + $0x8] sm:$0xff] %v339
  %344 = vst [vmem:[%s3 + $0x10] sm:$0xff] %v340
  %345 = vst [vmem:[%s3 + $0x18] sm:$0xff] %v341
  // Predicated region
  $region14: #{multi_pc_aligned_forward.49} parent=0 // pred_check
    _
  $region15: #{multi_pc_aligned_forward.49} parent=0 // pred_check_branch
    %347 = sbr.rel (0) target = $region17
  $region16: #{multi_pc_aligned_forward.49} parent=0 // pred_region
    _
  $region17: #{multi_pc_aligned_forward.49} parent=0 // pred_fallthru
    _
  // Predicated region
  $region18: #{multi_pc_aligned_forward.49} parent=0 // pred_check
    _
  $region19: #{multi_pc_aligned_forward.49} parent=0 // pred_check_branch
    %349 = sbr.rel (0) target = $region21
  $region20: #{multi_pc_aligned_forward.49} parent=0 // pred_region
    _
  $region21: #{multi_pc_aligned_forward.49} parent=0 // pred_fallthru
    _

// kernel: multi_pc_aligned_forward.51
$region0: #{multi_pc_aligned_forward.51}
  #allocation0 [shape = 'u32[]', space=smem, size = 0x4, offset = 0x4, fixed_abs, tag = 'smem constant byte address 0x4 - core index']
  #allocation1 [shape = 'u32[144,128]{1,0:T(1,128)}', space=vmem, size = 0x12000, scoped, tag = 'internal scratch']
  %s0 = inlined_call_operand.vmem [shape: bf16[8,72], index: 0, kind: input, shape index: {}]
  %s1 = inlined_call_operand.vmem [shape: f32[8,1], index: 1, kind: input, shape index: {}]
  %s2 = inlined_call_operand.vmem [shape: bf16[72,512], index: 2, kind: input, shape index: {}]
  %s3 = inlined_call_operand.vmem [shape: f32[8,512], index: 3, kind: output, shape index: {}]
  %s4 = sld [smem:[#allocation0]]
  $region22: #{multi_pc_aligned_forward.51} parent=0
    _
  %s6 = ssub.s32 1, %s4
  %s7 = scalar_select 0, %s6, %s4
  // Predicated region
  $region2: #{multi_pc_aligned_forward.51} parent=0 // pred_check
    _
  $region3: #{multi_pc_aligned_forward.51} parent=0 // pred_check_branch
    %9 = sbr.rel (0) target = $region5
  $region4: #{multi_pc_aligned_forward.51} parent=0 // pred_region
    _
  $region5: #{multi_pc_aligned_forward.51} parent=0 // pred_fallthru
    _
  // Predicated region
  $region6: #{multi_pc_aligned_forward.51} parent=0 // pred_check
    _
  $region7: #{multi_pc_aligned_forward.51} parent=0 // pred_check_branch
    %11 = sbr.rel (0) target = $region9
  $region8: #{multi_pc_aligned_forward.51} parent=0 // pred_region
    _
  $region9: #{multi_pc_aligned_forward.51} parent=0 // pred_fallthru
    _
  // Predicated region
  $region10: #{multi_pc_aligned_forward.51} parent=0 // pred_check
    _
  $region11: #{multi_pc_aligned_forward.51} parent=0 // pred_check_branch
    %13 = sbr.rel (0) target = $region13
  $region12: #{multi_pc_aligned_forward.51} parent=0 // pred_region
    _
  $region13: #{multi_pc_aligned_forward.51} parent=0 // pred_fallthru
    _
  %v15 = vld [vmem:[%s0] sm:$0xf]
  %v16 = vld [vmem:[%s2] sm:$0xff]
  %v17 = vld [vmem:[%s2 + $0x8] sm:$0xff]
  %v18 = vld [vmem:[%s2 + $0x10] sm:$0xff]
  %v19 = vld [vmem:[%s2 + $0x18] sm:$0xff]
  %v20 = vld [vmem:[%s2 + $0x20] sm:$0xff]
  %v21 = vld [vmem:[%s2 + $0x28] sm:$0xff]
  %v22 = vld [vmem:[%s2 + $0x30] sm:$0xff]
  %v23 = vld [vmem:[%s2 + $0x38] sm:$0xff]
  %v24 = vld [vmem:[%s2 + $0x40] sm:$0xff]
  %v25 = vld [vmem:[%s2 + $0x48] sm:$0xff]
  %v26 = vld [vmem:[%s2 + $0x50] sm:$0xff]
  %v27 = vld [vmem:[%s2 + $0x58] sm:$0xff]
  %v28 = vld [vmem:[%s2 + $0x60] sm:$0xff]
  %v29 = vld [vmem:[%s2 + $0x68] sm:$0xff]
  %v30 = vld [vmem:[%s2 + $0x70] sm:$0xff]
  %v31 = vld [vmem:[%s2 + $0x78] sm:$0xff]
  %v32 = vld [vmem:[%s2 + $0x80] sm:$0xff]
  %v33 = vld [vmem:[%s2 + $0x88] sm:$0xff]
  %v34 = vld [vmem:[%s1] sm:$0xff]
  %36 = vset.pattern.permute.xlu0 0
  %37 = vperm.xlu0 %36, %v34
  %v38 = vpop.permute.xlu0 %37
  %v58 = vunpack.c.l.b16 %v16
  %v59 = vunpack.c.h.b16 %v16
  %v60 = vunpack.c.l.b16 %v17
  %v61 = vunpack.c.h.b16 %v17
  %v62 = vunpack.c.l.b16 %v18
  %v63 = vunpack.c.h.b16 %v18
  %v64 = vunpack.c.l.b16 %v19
  %v65 = vunpack.c.h.b16 %v19
  %v66 = vunpack.c.l.b16 %v20
  %v67 = vunpack.c.h.b16 %v20
  %v68 = vunpack.c.l.b16 %v21
  %v69 = vunpack.c.h.b16 %v21
  %v70 = vunpack.c.l.b16 %v22
  %v71 = vunpack.c.h.b16 %v22
  %v72 = vunpack.c.l.b16 %v23
  %v73 = vunpack.c.h.b16 %v23
  %v74 = vunpack.c.l.b16 %v24
  %v75 = vunpack.c.h.b16 %v24
  %v76 = vunpack.c.l.b16 %v25
  %v77 = vunpack.c.h.b16 %v25
  %v78 = vunpack.c.l.b16 %v26
  %v79 = vunpack.c.h.b16 %v26
  %v80 = vunpack.c.l.b16 %v27
  %v81 = vunpack.c.h.b16 %v27
  %v82 = vunpack.c.l.b16 %v28
  %v83 = vunpack.c.h.b16 %v28
  %v84 = vunpack.c.l.b16 %v29
  %v85 = vunpack.c.h.b16 %v29
  %v86 = vunpack.c.l.b16 %v30
  %v87 = vunpack.c.h.b16 %v30
  %v88 = vunpack.c.l.b16 %v31
  %v89 = vunpack.c.h.b16 %v31
  %v90 = vunpack.c.l.b16 %v32
  %v91 = vunpack.c.h.b16 %v32
  %v92 = vunpack.c.l.b16 %v33
  %v93 = vunpack.c.h.b16 %v33
  %v94 = vpack.c.b16 %v62, %v58
  %v95 = vpack.c.b16 %v63, %v59
  %v96 = vpack.c.b16 %v64, %v60
  %v97 = vpack.c.b16 %v65, %v61
  %v98 = vpack.c.b16 %v70, %v66
  %v99 = vpack.c.b16 %v71, %v67
  %v100 = vpack.c.b16 %v72, %v68
  %v101 = vpack.c.b16 %v73, %v69
  %v102 = vpack.c.b16 %v78, %v74
  %v103 = vpack.c.b16 %v79, %v75
  %v104 = vpack.c.b16 %v80, %v76
  %v105 = vpack.c.b16 %v81, %v77
  %v106 = vpack.c.b16 %v86, %v82
  %v107 = vpack.c.b16 %v87, %v83
  %v108 = vpack.c.b16 %v88, %v84
  %v109 = vpack.c.b16 %v89, %v85
  %v110 = vpack.c.b16 %v90, %v90
  %v111 = vpack.c.b16 %v91, %v91
  %v112 = vpack.c.b16 %v92, %v92
  %v113 = vpack.c.b16 %v93, %v93
  %vm130 = vcmask 588800
  %v132 = vsel %vm130, %v15, 0
  %vm134 = vcmask 1043456
  %v136 = vsel %vm134, %v110, 0
  %v139 = vsel %vm134, %v111, 0
  %v142 = vsel %vm134, %v112, 0
  %v145 = vsel %vm134, %v113, 0
  %147 = vmatprep.subr.bf16.mxu0 0
  %148 = vmatpush1.bf16.msra.mxu0 0
  %149 = vmatprep.subr.bf16.mxu0 0
  %150 = vmatpush1.bf16.msra.mxu0 0
  %151 = vmatprep.subr.bf16.mxu0 0
  %152 = vmatpush1.bf16.msra.mxu0 0
  %153 = vmatprep.subr.bf16.mxu0 %v139
  %154 = vmatpush1.bf16.msra.mxu0 %v136
  %155 = vmatprep.subr.bf16.mxu0 %v107
  %156 = vmatpush1.bf16.msra.mxu0 %v106
  %157 = vmatprep.subr.bf16.mxu0 %v103
  %158 = vmatpush1.bf16.msra.mxu0 %v102
  %159 = vmatprep.subr.bf16.mxu0 %v99
  %160 = vmatpush1.bf16.msra.mxu0 %v98
  %161 = vmatprep.subr.bf16.mxu0 %v95
  %162 = vmatpush1.bf16.msra.mxu0 %v94
  %163 = vmatprep.subr.bf16.mxu0 0
  %164 = vmatpush2.bf16.msra.mxu0 0
  %165 = vmatprep.subr.bf16.mxu0 0
  %166 = vmatpush2.bf16.msra.mxu0 0
  %167 = vmatprep.subr.bf16.mxu0 0
  %168 = vmatpush2.bf16.msra.mxu0 0
  %169 = vmatprep.subr.bf16.mxu0 0
  %170 = vmatpush2.bf16.msra.mxu0 0
  %171 = vmatprep.subr.bf16.mxu0 0
  %172 = vmatpush2.bf16.msra.mxu0 0
  %173 = vmatprep.subr.bf16.mxu0 0
  %174 = vmatpush2.bf16.msra.mxu0 0
  %175 = vmatprep.subr.bf16.mxu0 0
  %176 = vmatpush2.bf16.msra.mxu0 0
  %177 = vmatprep.subr.bf16.mxu0 0
  %178 = vmatpush2.bf16.msra.mxu0 0
  %179 = vmatprep.mubr.bf16.mxu0 0
  %180 = vmatmul.mubr.bf16.gmra.mxu0 %v132
  %v181 = vpop.f32.mrf.mxu0
  %v182 = vadd.f32 %v38, %v181
  %v183 = vpop.f32.mrf.mxu0
  %v184 = vadd.f32 %v38, %v183
  %v185 = vpop.f32.mrf.mxu0
  %v186 = vpop.f32.mrf.mxu0
  %187 = vdwg.mxu0
  %188 = vmatprep.subr.bf16.mxu0 0
  %189 = vmatpush1.bf16.msra.mxu0 0
  %190 = vmatprep.subr.bf16.mxu0 0
  %191 = vmatpush1.bf16.msra.mxu0 0
  %192 = vmatprep.subr.bf16.mxu0 0
  %193 = vmatpush1.bf16.msra.mxu0 0
  %194 = vmatprep.subr.bf16.mxu0 %v145
  %195 = vmatpush1.bf16.msra.mxu0 %v142
  %196 = vmatprep.subr.bf16.mxu0 %v109
  %197 = vmatpush1.bf16.msra.mxu0 %v108
  %198 = vmatprep.subr.bf16.mxu0 %v105
  %199 = vmatpush1.bf16.msra.mxu0 %v104
  %200 = vmatprep.subr.bf16.mxu0 %v101
  %201 = vmatpush1.bf16.msra.mxu0 %v100
  %202 = vmatprep.subr.bf16.mxu0 %v97
  %203 = vmatpush1.bf16.msra.mxu0 %v96
  %204 = vmatprep.subr.bf16.mxu0 0
  %205 = vmatpush2.bf16.msra.mxu0 0
  %206 = vmatprep.subr.bf16.mxu0 0
  %207 = vmatpush2.bf16.msra.mxu0 0
  %208 = vmatprep.subr.bf16.mxu0 0
  %209 = vmatpush2.bf16.msra.mxu0 0
  %210 = vmatprep.subr.bf16.mxu0 0
  %211 = vmatpush2.bf16.msra.mxu0 0
  %212 = vmatprep.subr.bf16.mxu0 0
  %213 = vmatpush2.bf16.msra.mxu0 0
  %214 = vmatprep.subr.bf16.mxu0 0
  %215 = vmatpush2.bf16.msra.mxu0 0
  %216 = vmatprep.subr.bf16.mxu0 0
  %217 = vmatpush2.bf16.msra.mxu0 0
  %218 = vmatprep.subr.bf16.mxu0 0
  %219 = vmatpush2.bf16.msra.mxu0 0
  %220 = vmatprep.mubr.bf16.mxu0 0
  %221 = vmatmul.mubr.bf16.gmra.mxu0 %v132
  %v222 = vpop.f32.mrf.mxu0
  %v223 = vadd.f32 %v38, %v222
  %v224 = vpop.f32.mrf.mxu0
  %v225 = vadd.f32 %v38, %v224
  %v226 = vpop.f32.mrf.mxu0
  %v227 = vpop.f32.mrf.mxu0
  %228 = vdwg.mxu0
  %vm229 = vcmp.ge.f32.partialorder %v182, 0.0
  %vm230 = vcmp.ge.f32.partialorder %v184, 0.0
  %vm231 = vcmp.ge.f32.partialorder %v223, 0.0
  %vm232 = vcmp.ge.f32.partialorder %v225, 0.0
  %v233 = vmul.f32 %v182, 0.1
  %v234 = vmul.f32 %v184, 0.1
  %v235 = vmul.f32 %v223, 0.1
  %v236 = vmul.f32 %v225, 0.1
  %v237 = vsel %vm229, %v182, %v233
  %v238 = vsel %vm230, %v184, %v234
  %v239 = vsel %vm231, %v223, %v235
  %v240 = vsel %vm232, %v225, %v236
  %241 = vst [vmem:[%s3] sm:$0xff] %v237
  %242 = vst [vmem:[%s3 + $0x8] sm:$0xff] %v238
  %243 = vst [vmem:[%s3 + $0x10] sm:$0xff] %v239
  %244 = vst [vmem:[%s3 + $0x18] sm:$0xff] %v240
  // Predicated region
  $region14: #{multi_pc_aligned_forward.51} parent=0 // pred_check
    _
  $region15: #{multi_pc_aligned_forward.51} parent=0 // pred_check_branch
    %246 = sbr.rel (0) target = $region17
  $region16: #{multi_pc_aligned_forward.51} parent=0 // pred_region
    _
  $region17: #{multi_pc_aligned_forward.51} parent=0 // pred_fallthru
    _
  // Predicated region
  $region18: #{multi_pc_aligned_forward.51} parent=0 // pred_check
    _
  $region19: #{multi_pc_aligned_forward.51} parent=0 // pred_check_branch
    %248 = sbr.rel (0) target = $region21
  $region20: #{multi_pc_aligned_forward.51} parent=0 // pred_region
    _
  $region21: #{multi_pc_aligned_forward.51} parent=0 // pred_fallthru
    _

// kernel: multi_pc_aligned_forward.54
$region0: #{multi_pc_aligned_forward.54}
  #allocation0 [shape = 'u32[]', space=smem, size = 0x4, offset = 0x4, fixed_abs, tag = 'smem constant byte address 0x4 - core index']
  #allocation1 [shape = 'u32[144,128]{1,0:T(1,128)}', space=vmem, size = 0x12000, scoped, tag = 'internal scratch']
  %s0 = inlined_call_operand.vmem [shape: bf16[216,72], index: 0, kind: input, shape index: {}]
  %s1 = inlined_call_operand.vmem [shape: f32[216,1], index: 1, kind: input, shape index: {}]
  %s2 = inlined_call_operand.vmem [shape: bf16[72,512], index: 2, kind: input, shape index: {}]
  %s3 = inlined_call_operand.vmem [shape: f32[216,512], index: 3, kind: output, shape index: {}]
  %s4 = sld [smem:[#allocation0]]
  $region22: #{multi_pc_aligned_forward.54} parent=0
    _
  %s6 = ssub.s32 1, %s4
  %s7 = scalar_select 0, %s6, %s4
  // Predicated region
  $region2: #{multi_pc_aligned_forward.54} parent=0 // pred_check
    _
  $region3: #{multi_pc_aligned_forward.54} parent=0 // pred_check_branch
    %9 = sbr.rel (0) target = $region5
  $region4: #{multi_pc_aligned_forward.54} parent=0 // pred_region
    _
  $region5: #{multi_pc_aligned_forward.54} parent=0 // pred_fallthru
    _
  // Predicated region
  $region6: #{multi_pc_aligned_forward.54} parent=0 // pred_check
    _
  $region7: #{multi_pc_aligned_forward.54} parent=0 // pred_check_branch
    %11 = sbr.rel (0) target = $region9
  $region8: #{multi_pc_aligned_forward.54} parent=0 // pred_region
    _
  $region9: #{multi_pc_aligned_forward.54} parent=0 // pred_fallthru
    _
  // Predicated region
  $region10: #{multi_pc_aligned_forward.54} parent=0 // pred_check
    _
  $region11: #{multi_pc_aligned_forward.54} parent=0 // pred_check_branch
    %13 = sbr.rel (0) target = $region13
  $region12: #{multi_pc_aligned_forward.54} parent=0 // pred_region
    _
  $region13: #{multi_pc_aligned_forward.54} parent=0 // pred_fallthru
    _
  %v15 = vld [vmem:[%s0] sm:$0xf]
  %v16 = vld [vmem:[%s0 + $0x4] sm:$0xf]
  %v17 = vld [vmem:[%s0 + $0x8] sm:$0xf]
  %v18 = vld [vmem:[%s0 + $0xc] sm:$0xf]
  %v19 = vld [vmem:[%s0 + $0x10] sm:$0xf]
  %v20 = vld [vmem:[%s0 + $0x14] sm:$0xf]
  %v21 = vld [vmem:[%s0 + $0x18] sm:$0xf]
  %v22 = vld [vmem:[%s0 + $0x1c] sm:$0xf]
  %v23 = vld [vmem:[%s0 + $0x20] sm:$0xf]
  %v24 = vld [vmem:[%s0 + $0x24] sm:$0xf]
  %v25 = vld [vmem:[%s0 + $0x28] sm:$0xf]
  %v26 = vld [vmem:[%s0 + $0x2c] sm:$0xf]
  %v27 = vld [vmem:[%s0 + $0x30] sm:$0xf]
  %v28 = vld [vmem:[%s0 + $0x34] sm:$0xf]
  %v29 = vld [vmem:[%s0 + $0x38] sm:$0xf]
  %v30 = vld [vmem:[%s0 + $0x3c] sm:$0xf]
  %v31 = vld [vmem:[%s0 + $0x40] sm:$0xf]
  %v32 = vld [vmem:[%s0 + $0x44] sm:$0xf]
  %v33 = vld [vmem:[%s0 + $0x48] sm:$0xf]
  %v34 = vld [vmem:[%s0 + $0x4c] sm:$0xf]
  %v35 = vld [vmem:[%s0 + $0x50] sm:$0xf]
  %v36 = vld [vmem:[%s0 + $0x54] sm:$0xf]
  %v37 = vld [vmem:[%s0 + $0x58] sm:$0xf]
  %v38 = vld [vmem:[%s0 + $0x5c] sm:$0xf]
  %v39 = vld [vmem:[%s0 + $0x60] sm:$0xf]
  %v40 = vld [vmem:[%s0 + $0x64] sm:$0xf]
  %v41 = vld [vmem:[%s0 + $0x68] sm:$0xf]
  %v42 = vld [vmem:[%s2] sm:$0xff]
  %v43 = vld [vmem:[%s2 + $0x8] sm:$0xff]
  %v44 = vld [vmem:[%s2 + $0x10] sm:$0xff]
  %v45 = vld [vmem:[%s2 + $0x18] sm:$0xff]
  %v46 = vld [vmem:[%s2 + $0x20] sm:$0xff]
  %v47 = vld [vmem:[%s2 + $0x28] sm:$0xff]
  %v48 = vld [vmem:[%s2 + $0x30] sm:$0xff]
  %v49 = vld [vmem:[%s2 + $0x38] sm:$0xff]
  %v50 = vld [vmem:[%s2 + $0x40] sm:$0xff]
  %v51 = vld [vmem:[%s2 + $0x48] sm:$0xff]
  %v52 = vld [vmem:[%s2 + $0x50] sm:$0xff]
  %v53 = vld [vmem:[%s2 + $0x58] sm:$0xff]
  %v54 = vld [vmem:[%s2 + $0x60] sm:$0xff]
  %v55 = vld [vmem:[%s2 + $0x68] sm:$0xff]
  %v56 = vld [vmem:[%s2 + $0x70] sm:$0xff]
  %v57 = vld [vmem:[%s2 + $0x78] sm:$0xff]
  %v58 = vld [vmem:[%s2 + $0x80] sm:$0xff]
  %v59 = vld [vmem:[%s2 + $0x88] sm:$0xff]
  %v60 = vld [vmem:[%s1] sm:$0xff]
  %v61 = vld [vmem:[%s1 + $0x8] sm:$0xff]
  %v62 = vld [vmem:[%s1 + $0x10] sm:$0xff]
  %v63 = vld [vmem:[%s1 + $0x18] sm:$0xff]
  %v64 = vld [vmem:[%s1 + $0x20] sm:$0xff]
  %v65 = vld [vmem:[%s1 + $0x28] sm:$0xff]
  %v66 = vld [vmem:[%s1 + $0x30] sm:$0xff]
  %v67 = vld [vmem:[%s1 + $0x38] sm:$0xff]
  %v68 = vld [vmem:[%s1 + $0x40] sm:$0xff]
  %v69 = vld [vmem:[%s1 + $0x48] sm:$0xff]
  %v70 = vld [vmem:[%s1 + $0x50] sm:$0xff]
  %v71 = vld [vmem:[%s1 + $0x58] sm:$0xff]
  %v72 = vld [vmem:[%s1 + $0x60] sm:$0xff]
  %v73 = vld [vmem:[%s1 + $0x68] sm:$0xff]
  %v74 = vld [vmem:[%s1 + $0x70] sm:$0xff]
  %v75 = vld [vmem:[%s1 + $0x78] sm:$0xff]
  %v76 = vld [vmem:[%s1 + $0x80] sm:$0xff]
  %v77 = vld [vmem:[%s1 + $0x88] sm:$0xff]
  %v78 = vld [vmem:[%s1 + $0x90] sm:$0xff]
  %v79 = vld [vmem:[%s1 + $0x98] sm:$0xff]
  %v80 = vld [vmem:[%s1 + $0xa0] sm:$0xff]
  %v81 = vld [vmem:[%s1 + $0xa8] sm:$0xff]
  %v82 = vld [vmem:[%s1 + $0xb0] sm:$0xff]
  %v83 = vld [vmem:[%s1 + $0xb8] sm:$0xff]
  %v84 = vld [vmem:[%s1 + $0xc0] sm:$0xff]
  %v85 = vld [vmem:[%s1 + $0xc8] sm:$0xff]
  %v86 = vld [vmem:[%s1 + $0xd0] sm:$0xff]
  %88 = vset.pattern.permute.xlu0 0
  %89 = vperm.xlu0 %88, %v60
  %v90 = vpop.permute.xlu0 %89
  %93 = vset.pattern.permute.xlu0 0
  %94 = vperm.xlu0 %93, %v61
  %v95 = vpop.permute.xlu0 %94
  %98 = vset.pattern.permute.xlu0 0
  %99 = vperm.xlu0 %98, %v62
  %v100 = vpop.permute.xlu0 %99
  %103 = vset.pattern.permute.xlu0 0
  %104 = vperm.xlu0 %103, %v63
  %v105 = vpop.permute.xlu0 %104
  %108 = vset.pattern.permute.xlu0 0
  %109 = vperm.xlu0 %108, %v64
  %v110 = vpop.permute.xlu0 %109
  %113 = vset.pattern.permute.xlu0 0
  %114 = vperm.xlu0 %113, %v65
  %v115 = vpop.permute.xlu0 %114
  %118 = vset.pattern.permute.xlu0 0
  %119 = vperm.xlu0 %118, %v66
  %v120 = vpop.permute.xlu0 %119
  %123 = vset.pattern.permute.xlu0 0
  %124 = vperm.xlu0 %123, %v67
  %v125 = vpop.permute.xlu0 %124
  %128 = vset.pattern.permute.xlu0 0
  %129 = vperm.xlu0 %128, %v68
  %v130 = vpop.permute.xlu0 %129
  %133 = vset.pattern.permute.xlu0 0
  %134 = vperm.xlu0 %133, %v69
  %v135 = vpop.permute.xlu0 %134
  %138 = vset.pattern.permute.xlu0 0
  %139 = vperm.xlu0 %138, %v70
  %v140 = vpop.permute.xlu0 %139
  %143 = vset.pattern.permute.xlu0 0
  %144 = vperm.xlu0 %143, %v71
  %v145 = vpop.permute.xlu0 %144
  %148 = vset.pattern.permute.xlu0 0
  %149 = vperm.xlu0 %148, %v72
  %v150 = vpop.permute.xlu0 %149
  %153 = vset.pattern.permute.xlu0 0
  %154 = vperm.xlu0 %153, %v73
  %v155 = vpop.permute.xlu0 %154
  %158 = vset.pattern.permute.xlu0 0
  %159 = vperm.xlu0 %158, %v74
  %v160 = vpop.permute.xlu0 %159
  %163 = vset.pattern.permute.xlu0 0
  %164 = vperm.xlu0 %163, %v75
  %v165 = vpop.permute.xlu0 %164
  %168 = vset.pattern.permute.xlu0 0
  %169 = vperm.xlu0 %168, %v76
  %v170 = vpop.permute.xlu0 %169
  %173 = vset.pattern.permute.xlu0 0
  %174 = vperm.xlu0 %173, %v77
  %v175 = vpop.permute.xlu0 %174
  %178 = vset.pattern.permute.xlu0 0
  %179 = vperm.xlu0 %178, %v78
  %v180 = vpop.permute.xlu0 %179
  %183 = vset.pattern.permute.xlu0 0
  %184 = vperm.xlu0 %183, %v79
  %v185 = vpop.permute.xlu0 %184
  %188 = vset.pattern.permute.xlu0 0
  %189 = vperm.xlu0 %188, %v80
  %v190 = vpop.permute.xlu0 %189
  %193 = vset.pattern.permute.xlu0 0
  %194 = vperm.xlu0 %193, %v81
  %v195 = vpop.permute.xlu0 %194
  %198 = vset.pattern.permute.xlu0 0
  %199 = vperm.xlu0 %198, %v82
  %v200 = vpop.permute.xlu0 %199
  %203 = vset.pattern.permute.xlu0 0
  %204 = vperm.xlu0 %203, %v83
  %v205 = vpop.permute.xlu0 %204
  %208 = vset.pattern.permute.xlu0 0
  %209 = vperm.xlu0 %208, %v84
  %v210 = vpop.permute.xlu0 %209
  %213 = vset.pattern.permute.xlu0 0
  %214 = vperm.xlu0 %213, %v85
  %v215 = vpop.permute.xlu0 %214
  %218 = vset.pattern.permute.xlu0 0
  %219 = vperm.xlu0 %218, %v86
  %v220 = vpop.permute.xlu0 %219
  %v249 = vunpack.c.l.b16 %v15
  %v250 = vunpack.c.l.b16 %v16
  %v251 = vunpack.c.l.b16 %v17
  %v252 = vunpack.c.l.b16 %v18
  %v253 = vunpack.c.l.b16 %v19
  %v254 = vunpack.c.l.b16 %v20
  %v255 = vunpack.c.l.b16 %v21
  %v256 = vunpack.c.l.b16 %v22
  %v257 = vunpack.c.l.b16 %v23
  %v258 = vunpack.c.l.b16 %v24
  %v259 = vunpack.c.l.b16 %v25
  %v260 = vunpack.c.l.b16 %v26
  %v261 = vunpack.c.l.b16 %v27
  %v262 = vunpack.c.l.b16 %v28
  %v263 = vunpack.c.l.b16 %v29
  %v264 = vunpack.c.l.b16 %v30
  %v265 = vunpack.c.l.b16 %v31
  %v266 = vunpack.c.l.b16 %v32
  %v267 = vunpack.c.l.b16 %v33
  %v268 = vunpack.c.l.b16 %v34
  %v269 = vunpack.c.l.b16 %v35
  %v270 = vunpack.c.l.b16 %v36
  %v271 = vunpack.c.l.b16 %v37
  %v272 = vunpack.c.l.b16 %v38
  %v273 = vunpack.c.l.b16 %v39
  %v274 = vunpack.c.l.b16 %v40
  %v275 = vunpack.c.l.b16 %v41
  %v276 = vpack.c.b16 %v250, %v249
  %v277 = vpack.c.b16 %v252, %v251
  %v278 = vpack.c.b16 %v254, %v253
  %v279 = vpack.c.b16 %v256, %v255
  %v280 = vpack.c.b16 %v258, %v257
  %v281 = vpack.c.b16 %v260, %v259
  %v282 = vpack.c.b16 %v262, %v261
  %v283 = vpack.c.b16 %v264, %v263
  %v284 = vpack.c.b16 %v266, %v265
  %v285 = vpack.c.b16 %v268, %v267
  %v286 = vpack.c.b16 %v270, %v269
  %v287 = vpack.c.b16 %v272, %v271
  %v288 = vpack.c.b16 %v274, %v273
  %v289 = vpack.c.b16 %v275, %v275
  %v308 = vunpack.c.l.b16 %v42
  %v309 = vunpack.c.h.b16 %v42
  %v310 = vunpack.c.l.b16 %v43
  %v311 = vunpack.c.h.b16 %v43
  %v312 = vunpack.c.l.b16 %v44
  %v313 = vunpack.c.h.b16 %v44
  %v314 = vunpack.c.l.b16 %v45
  %v315 = vunpack.c.h.b16 %v45
  %v316 = vunpack.c.l.b16 %v46
  %v317 = vunpack.c.h.b16 %v46
  %v318 = vunpack.c.l.b16 %v47
  %v319 = vunpack.c.h.b16 %v47
  %v320 = vunpack.c.l.b16 %v48
  %v321 = vunpack.c.h.b16 %v48
  %v322 = vunpack.c.l.b16 %v49
  %v323 = vunpack.c.h.b16 %v49
  %v324 = vunpack.c.l.b16 %v50
  %v325 = vunpack.c.h.b16 %v50
  %v326 = vunpack.c.l.b16 %v51
  %v327 = vunpack.c.h.b16 %v51
  %v328 = vunpack.c.l.b16 %v52
  %v329 = vunpack.c.h.b16 %v52
  %v330 = vunpack.c.l.b16 %v53
  %v331 = vunpack.c.h.b16 %v53
  %v332 = vunpack.c.l.b16 %v54
  %v333 = vunpack.c.h.b16 %v54
  %v334 = vunpack.c.l.b16 %v55
  %v335 = vunpack.c.h.b16 %v55
  %v336 = vunpack.c.l.b16 %v56
  %v337 = vunpack.c.h.b16 %v56
  %v338 = vunpack.c.l.b16 %v57
  %v339 = vunpack.c.h.b16 %v57
  %v340 = vunpack.c.l.b16 %v58
  %v341 = vunpack.c.h.b16 %v58
  %v342 = vunpack.c.l.b16 %v59
  %v343 = vunpack.c.h.b16 %v59
  %v344 = vpack.c.b16 %v312, %v308
  %v345 = vpack.c.b16 %v313, %v309
  %v346 = vpack.c.b16 %v314, %v310
  %v347 = vpack.c.b16 %v315, %v311
  %v348 = vpack.c.b16 %v320, %v316
  %v349 = vpack.c.b16 %v321, %v317
  %v350 = vpack.c.b16 %v322, %v318
  %v351 = vpack.c.b16 %v323, %v319
  %v352 = vpack.c.b16 %v328, %v324
  %v353 = vpack.c.b16 %v329, %v325
  %v354 = vpack.c.b16 %v330, %v326
  %v355 = vpack.c.b16 %v331, %v327
  %v356 = vpack.c.b16 %v336, %v332
  %v357 = vpack.c.b16 %v337, %v333
  %v358 = vpack.c.b16 %v338, %v334
  %v359 = vpack.c.b16 %v339, %v335
  %v360 = vpack.c.b16 %v340, %v340
  %v361 = vpack.c.b16 %v341, %v341
  %v362 = vpack.c.b16 %v342, %v342
  %v363 = vpack.c.b16 %v343, %v343
  %vm380 = vcmask 588800
  %v382 = vsel %vm380, %v276, 0
  %v385 = vsel %vm380, %v277, 0
  %v388 = vsel %vm380, %v278, 0
  %v391 = vsel %vm380, %v279, 0
  %v394 = vsel %vm380, %v280, 0
  %v397 = vsel %vm380, %v281, 0
  %v400 = vsel %vm380, %v282, 0
  %v403 = vsel %vm380, %v283, 0
  %v406 = vsel %vm380, %v284, 0
  %v409 = vsel %vm380, %v285, 0
  %v412 = vsel %vm380, %v286, 0
  %v415 = vsel %vm380, %v287, 0
  %v418 = vsel %vm380, %v288, 0
  %v421 = vsel %vm380, %v289, 0
  %vm423 = vcmask 1043456
  %v425 = vsel %vm423, %v360, 0
  %v428 = vsel %vm423, %v361, 0
  %v431 = vsel %vm423, %v362, 0
  %v434 = vsel %vm423, %v363, 0
  %436 = vmatprep.subr.bf16.mxu0 0
  %437 = vmatpush1.bf16.msra.mxu0 0
  %438 = vmatprep.subr.bf16.mxu0 0
  %439 = vmatpush1.bf16.msra.mxu0 0
  %440 = vmatprep.subr.bf16.mxu0 0
  %441 = vmatpush1.bf16.msra.mxu0 0
  %442 = vmatprep.subr.bf16.mxu0 %v428
  %443 = vmatpush1.bf16.msra.mxu0 %v425
  %444 = vmatprep.subr.bf16.mxu0 %v357
  %445 = vmatpush1.bf16.msra.mxu0 %v356
  %446 = vmatprep.subr.bf16.mxu0 %v353
  %447 = vmatpush1.bf16.msra.mxu0 %v352
  %448 = vmatprep.subr.bf16.mxu0 %v349
  %449 = vmatpush1.bf16.msra.mxu0 %v348
  %450 = vmatprep.subr.bf16.mxu0 %v345
  %451 = vmatpush1.bf16.msra.mxu0 %v344
  %452 = vmatprep.subr.bf16.mxu0 0
  %453 = vmatpush2.bf16.msra.mxu0 0
  %454 = vmatprep.subr.bf16.mxu0 0
  %455 = vmatpush2.bf16.msra.mxu0 0
  %456 = vmatprep.subr.bf16.mxu0 0
  %457 = vmatpush2.bf16.msra.mxu0 0
  %458 = vmatprep.subr.bf16.mxu0 0
  %459 = vmatpush2.bf16.msra.mxu0 0
  %460 = vmatprep.subr.bf16.mxu0 0
  %461 = vmatpush2.bf16.msra.mxu0 0
  %462 = vmatprep.subr.bf16.mxu0 0
  %463 = vmatpush2.bf16.msra.mxu0 0
  %464 = vmatprep.subr.bf16.mxu0 0
  %465 = vmatpush2.bf16.msra.mxu0 0
  %466 = vmatprep.subr.bf16.mxu0 0
  %467 = vmatpush2.bf16.msra.mxu0 0
  %468 = vmatprep.mubr.bf16.mxu0 0
  %469 = vmatmul.mubr.bf16.gmra.mxu0 %v382
  %v470 = vpop.f32.mrf.mxu0
  %v471 = vadd.f32 %v90, %v470
  %v472 = vpop.f32.mrf.mxu0
  %v473 = vadd.f32 %v90, %v472
  %v474 = vpop.f32.mrf.mxu0
  %v475 = vadd.f32 %v95, %v474
  %v476 = vpop.f32.mrf.mxu0
  %v477 = vadd.f32 %v95, %v476
  %478 = vmatprep.mubr.bf16.mxu0 0
  %479 = vmatmul.mubr.bf16.gmra.mxu0 %v385
  %v480 = vpop.f32.mrf.mxu0
  %v481 = vadd.f32 %v100, %v480
  %v482 = vpop.f32.mrf.mxu0
  %v483 = vadd.f32 %v100, %v482
  %v484 = vpop.f32.mrf.mxu0
  %v485 = vadd.f32 %v105, %v484
  %v486 = vpop.f32.mrf.mxu0
  %v487 = vadd.f32 %v105, %v486
  %488 = vmatprep.mubr.bf16.mxu0 0
  %489 = vmatmul.mubr.bf16.gmra.mxu0 %v388
  %v490 = vpop.f32.mrf.mxu0
  %v491 = vadd.f32 %v110, %v490
  %v492 = vpop.f32.mrf.mxu0
  %v493 = vadd.f32 %v110, %v492
  %v494 = vpop.f32.mrf.mxu0
  %v495 = vadd.f32 %v115, %v494
  %v496 = vpop.f32.mrf.mxu0
  %v497 = vadd.f32 %v115, %v496
  %498 = vmatprep.mubr.bf16.mxu0 0
  %499 = vmatmul.mubr.bf16.gmra.mxu0 %v391
  %v500 = vpop.f32.mrf.mxu0
  %v501 = vadd.f32 %v120, %v500
  %v502 = vpop.f32.mrf.mxu0
  %v503 = vadd.f32 %v120, %v502
  %v504 = vpop.f32.mrf.mxu0
  %v505 = vadd.f32 %v125, %v504
  %v506 = vpop.f32.mrf.mxu0
  %v507 = vadd.f32 %v125, %v506
  %508 = vmatprep.mubr.bf16.mxu0 0
  %509 = vmatmul.mubr.bf16.gmra.mxu0 %v394
  %v510 = vpop.f32.mrf.mxu0
  %v511 = vadd.f32 %v130, %v510
  %v512 = vpop.f32.mrf.mxu0
  %v513 = vadd.f32 %v130, %v512
  %v514 = vpop.f32.mrf.mxu0
  %v515 = vadd.f32 %v135, %v514
  %v516 = vpop.f32.mrf.mxu0
  %v517 = vadd.f32 %v135, %v516
  %518 = vmatprep.mubr.bf16.mxu0 0
  %519 = vmatmul.mubr.bf16.gmra.mxu0 %v397
  %v520 = vpop.f32.mrf.mxu0
  %v521 = vadd.f32 %v140, %v520
  %v522 = vpop.f32.mrf.mxu0
  %v523 = vadd.f32 %v140, %v522
  %v524 = vpop.f32.mrf.mxu0
  %v525 = vadd.f32 %v145, %v524
  %v526 = vpop.f32.mrf.mxu0
  %v527 = vadd.f32 %v145, %v526
  %528 = vmatprep.mubr.bf16.mxu0 0
  %529 = vmatmul.mubr.bf16.gmra.mxu0 %v400
  %v530 = vpop.f32.mrf.mxu0
  %v531 = vadd.f32 %v150, %v530
  %v532 = vpop.f32.mrf.mxu0
  %v533 = vadd.f32 %v150, %v532
  %v534 = vpop.f32.mrf.mxu0
  %v535 = vadd.f32 %v155, %v534
  %v536 = vpop.f32.mrf.mxu0
  %v537 = vadd.f32 %v155, %v536
  %538 = vmatprep.mubr.bf16.mxu0 0
  %539 = vmatmul.mubr.bf16.gmra.mxu0 %v403
  %v540 = vpop.f32.mrf.mxu0
  %v541 = vadd.f32 %v160, %v540
  %v542 = vpop.f32.mrf.mxu0
  %v543 = vadd.f32 %v160, %v542
  %v544 = vpop.f32.mrf.mxu0
  %v545 = vadd.f32 %v165, %v544
  %v546 = vpop.f32.mrf.mxu0
  %v547 = vadd.f32 %v165, %v546
  %548 = vmatprep.mubr.bf16.mxu0 0
  %549 = vmatmul.mubr.bf16.gmra.mxu0 %v406
  %v550 = vpop.f32.mrf.mxu0
  %v551 = vadd.f32 %v170, %v550
  %v552 = vpop.f32.mrf.mxu0
  %v553 = vadd.f32 %v170, %v552
  %v554 = vpop.f32.mrf.mxu0
  %v555 = vadd.f32 %v175, %v554
  %v556 = vpop.f32.mrf.mxu0
  %v557 = vadd.f32 %v175, %v556
  %558 = vmatprep.mubr.bf16.mxu0 0
  %559 = vmatmul.mubr.bf16.gmra.mxu0 %v409
  %v560 = vpop.f32.mrf.mxu0
  %v561 = vadd.f32 %v180, %v560
  %v562 = vpop.f32.mrf.mxu0
  %v563 = vadd.f32 %v180, %v562
  %v564 = vpop.f32.mrf.mxu0
  %v565 = vadd.f32 %v185, %v564
  %v566 = vpop.f32.mrf.mxu0
  %v567 = vadd.f32 %v185, %v566
  %568 = vmatprep.mubr.bf16.mxu0 0
  %569 = vmatmul.mubr.bf16.gmra.mxu0 %v412
  %v570 = vpop.f32.mrf.mxu0
  %v571 = vadd.f32 %v190, %v570
  %v572 = vpop.f32.mrf.mxu0
  %v573 = vadd.f32 %v190, %v572
  %v574 = vpop.f32.mrf.mxu0
  %v575 = vadd.f32 %v195, %v574
  %v576 = vpop.f32.mrf.mxu0
  %v577 = vadd.f32 %v195, %v576
  %578 = vmatprep.mubr.bf16.mxu0 0
  %579 = vmatmul.mubr.bf16.gmra.mxu0 %v415
  %v580 = vpop.f32.mrf.mxu0
  %v581 = vadd.f32 %v200, %v580
  %v582 = vpop.f32.mrf.mxu0
  %v583 = vadd.f32 %v200, %v582
  %v584 = vpop.f32.mrf.mxu0
  %v585 = vadd.f32 %v205, %v584
  %v586 = vpop.f32.mrf.mxu0
  %v587 = vadd.f32 %v205, %v586
  %588 = vmatprep.mubr.bf16.mxu0 0
  %589 = vmatmul.mubr.bf16.gmra.mxu0 %v418
  %v590 = vpop.f32.mrf.mxu0
  %v591 = vadd.f32 %v210, %v590
  %v592 = vpop.f32.mrf.mxu0
  %v593 = vadd.f32 %v210, %v592
  %v594 = vpop.f32.mrf.mxu0
  %v595 = vadd.f32 %v215, %v594
  %v596 = vpop.f32.mrf.mxu0
  %v597 = vadd.f32 %v215, %v596
  %598 = vmatprep.mubr.bf16.mxu0 0
  %599 = vmatmul.mubr.bf16.gmra.mxu0 %v421
  %v600 = vpop.f32.mrf.mxu0
  %v601 = vadd.f32 %v220, %v600
  %v602 = vpop.f32.mrf.mxu0
  %v603 = vadd.f32 %v220, %v602
  %v604 = vpop.f32.mrf.mxu0
  %v605 = vpop.f32.mrf.mxu0
  %606 = vdwg.mxu0
  %607 = vmatprep.subr.bf16.mxu0 0
  %608 = vmatpush1.bf16.msra.mxu0 0
  %609 = vmatprep.subr.bf16.mxu0 0
  %610 = vmatpush1.bf16.msra.mxu0 0
  %611 = vmatprep.subr.bf16.mxu0 0
  %612 = vmatpush1.bf16.msra.mxu0 0
  %613 = vmatprep.subr.bf16.mxu0 %v434
  %614 = vmatpush1.bf16.msra.mxu0 %v431
  %615 = vmatprep.subr.bf16.mxu0 %v359
  %616 = vmatpush1.bf16.msra.mxu0 %v358
  %617 = vmatprep.subr.bf16.mxu0 %v355
  %618 = vmatpush1.bf16.msra.mxu0 %v354
  %619 = vmatprep.subr.bf16.mxu0 %v351
  %620 = vmatpush1.bf16.msra.mxu0 %v350
  %621 = vmatprep.subr.bf16.mxu0 %v347
  %622 = vmatpush1.bf16.msra.mxu0 %v346
  %623 = vmatprep.subr.bf16.mxu0 0
  %624 = vmatpush2.bf16.msra.mxu0 0
  %625 = vmatprep.subr.bf16.mxu0 0
  %626 = vmatpush2.bf16.msra.mxu0 0
  %627 = vmatprep.subr.bf16.mxu0 0
  %628 = vmatpush2.bf16.msra.mxu0 0
  %629 = vmatprep.subr.bf16.mxu0 0
  %630 = vmatpush2.bf16.msra.mxu0 0
  %631 = vmatprep.subr.bf16.mxu0 0
  %632 = vmatpush2.bf16.msra.mxu0 0
  %633 = vmatprep.subr.bf16.mxu0 0
  %634 = vmatpush2.bf16.msra.mxu0 0
  %635 = vmatprep.subr.bf16.mxu0 0
  %636 = vmatpush2.bf16.msra.mxu0 0
  %637 = vmatprep.subr.bf16.mxu0 0
  %638 = vmatpush2.bf16.msra.mxu0 0
  %639 = vmatprep.mubr.bf16.mxu0 0
  %640 = vmatmul.mubr.bf16.gmra.mxu0 %v382
  %v641 = vpop.f32.mrf.mxu0
  %v642 = vadd.f32 %v90, %v641
  %v643 = vpop.f32.mrf.mxu0
  %v644 = vadd.f32 %v90, %v643
  %v645 = vpop.f32.mrf.mxu0
  %v646 = vadd.f32 %v95, %v645
  %v647 = vpop.f32.mrf.mxu0
  %v648 = vadd.f32 %v95, %v647
  %649 = vmatprep.mubr.bf16.mxu0 0
  %650 = vmatmul.mubr.bf16.gmra.mxu0 %v385
  %v651 = vpop.f32.mrf.mxu0
  %v652 = vadd.f32 %v100, %v651
  %v653 = vpop.f32.mrf.mxu0
  %v654 = vadd.f32 %v100, %v653
  %v655 = vpop.f32.mrf.mxu0
  %v656 = vadd.f32 %v105, %v655
  %v657 = vpop.f32.mrf.mxu0
  %v658 = vadd.f32 %v105, %v657
  %659 = vmatprep.mubr.bf16.mxu0 0
  %660 = vmatmul.mubr.bf16.gmra.mxu0 %v388
  %v661 = vpop.f32.mrf.mxu0
  %v662 = vadd.f32 %v110, %v661
  %v663 = vpop.f32.mrf.mxu0
  %v664 = vadd.f32 %v110, %v663
  %v665 = vpop.f32.mrf.mxu0
  %v666 = vadd.f32 %v115, %v665
  %v667 = vpop.f32.mrf.mxu0
  %v668 = vadd.f32 %v115, %v667
  %669 = vmatprep.mubr.bf16.mxu0 0
  %670 = vmatmul.mubr.bf16.gmra.mxu0 %v391
  %v671 = vpop.f32.mrf.mxu0
  %v672 = vadd.f32 %v120, %v671
  %v673 = vpop.f32.mrf.mxu0
  %v674 = vadd.f32 %v120, %v673
  %v675 = vpop.f32.mrf.mxu0
  %v676 = vadd.f32 %v125, %v675
  %v677 = vpop.f32.mrf.mxu0
  %v678 = vadd.f32 %v125, %v677
  %679 = vmatprep.mubr.bf16.mxu0 0
  %680 = vmatmul.mubr.bf16.gmra.mxu0 %v394
  %v681 = vpop.f32.mrf.mxu0
  %v682 = vadd.f32 %v130, %v681
  %v683 = vpop.f32.mrf.mxu0
  %v684 = vadd.f32 %v130, %v683
  %v685 = vpop.f32.mrf.mxu0
  %v686 = vadd.f32 %v135, %v685
  %v687 = vpop.f32.mrf.mxu0
  %v688 = vadd.f32 %v135, %v687
  %689 = vmatprep.mubr.bf16.mxu0 0
  %690 = vmatmul.mubr.bf16.gmra.mxu0 %v397
  %v691 = vpop.f32.mrf.mxu0
  %v692 = vadd.f32 %v140, %v691
  %v693 = vpop.f32.mrf.mxu0
  %v694 = vadd.f32 %v140, %v693
  %v695 = vpop.f32.mrf.mxu0
  %v696 = vadd.f32 %v145, %v695
  %v697 = vpop.f32.mrf.mxu0
  %v698 = vadd.f32 %v145, %v697
  %699 = vmatprep.mubr.bf16.mxu0 0
  %700 = vmatmul.mubr.bf16.gmra.mxu0 %v400
  %v701 = vpop.f32.mrf.mxu0
  %v702 = vadd.f32 %v150, %v701
  %v703 = vpop.f32.mrf.mxu0
  %v704 = vadd.f32 %v150, %v703
  %v705 = vpop.f32.mrf.mxu0
  %v706 = vadd.f32 %v155, %v705
  %v707 = vpop.f32.mrf.mxu0
  %v708 = vadd.f32 %v155, %v707
  %709 = vmatprep.mubr.bf16.mxu0 0
  %710 = vmatmul.mubr.bf16.gmra.mxu0 %v403
  %v711 = vpop.f32.mrf.mxu0
  %v712 = vadd.f32 %v160, %v711
  %v713 = vpop.f32.mrf.mxu0
  %v714 = vadd.f32 %v160, %v713
  %v715 = vpop.f32.mrf.mxu0
  %v716 = vadd.f32 %v165, %v715
  %v717 = vpop.f32.mrf.mxu0
  %v718 = vadd.f32 %v165, %v717
  %719 = vmatprep.mubr.bf16.mxu0 0
  %720 = vmatmul.mubr.bf16.gmra.mxu0 %v406
  %v721 = vpop.f32.mrf.mxu0
  %v722 = vadd.f32 %v170, %v721
  %v723 = vpop.f32.mrf.mxu0
  %v724 = vadd.f32 %v170, %v723
  %v725 = vpop.f32.mrf.mxu0
  %v726 = vadd.f32 %v175, %v725
  %v727 = vpop.f32.mrf.mxu0
  %v728 = vadd.f32 %v175, %v727
  %729 = vmatprep.mubr.bf16.mxu0 0
  %730 = vmatmul.mubr.bf16.gmra.mxu0 %v409
  %v731 = vpop.f32.mrf.mxu0
  %v732 = vadd.f32 %v180, %v731
  %v733 = vpop.f32.mrf.mxu0
  %v734 = vadd.f32 %v180, %v733
  %v735 = vpop.f32.mrf.mxu0
  %v736 = vadd.f32 %v185, %v735
  %v737 = vpop.f32.mrf.mxu0
  %v738 = vadd.f32 %v185, %v737
  %739 = vmatprep.mubr.bf16.mxu0 0
  %740 = vmatmul.mubr.bf16.gmra.mxu0 %v412
  %v741 = vpop.f32.mrf.mxu0
  %v742 = vadd.f32 %v190, %v741
  %v743 = vpop.f32.mrf.mxu0
  %v744 = vadd.f32 %v190, %v743
  %v745 = vpop.f32.mrf.mxu0
  %v746 = vadd.f32 %v195, %v745
  %v747 = vpop.f32.mrf.mxu0
  %v748 = vadd.f32 %v195, %v747
  %749 = vmatprep.mubr.bf16.mxu0 0
  %750 = vmatmul.mubr.bf16.gmra.mxu0 %v415
  %v751 = vpop.f32.mrf.mxu0
  %v752 = vadd.f32 %v200, %v751
  %v753 = vpop.f32.mrf.mxu0
  %v754 = vadd.f32 %v200, %v753
  %v755 = vpop.f32.mrf.mxu0
  %v756 = vadd.f32 %v205, %v755
  %v757 = vpop.f32.mrf.mxu0
  %v758 = vadd.f32 %v205, %v757
  %759 = vmatprep.mubr.bf16.mxu0 0
  %760 = vmatmul.mubr.bf16.gmra.mxu0 %v418
  %v761 = vpop.f32.mrf.mxu0
  %v762 = vadd.f32 %v210, %v761
  %v763 = vpop.f32.mrf.mxu0
  %v764 = vadd.f32 %v210, %v763
  %v765 = vpop.f32.mrf.mxu0
  %v766 = vadd.f32 %v215, %v765
  %v767 = vpop.f32.mrf.mxu0
  %v768 = vadd.f32 %v215, %v767
  %769 = vmatprep.mubr.bf16.mxu0 0
  %770 = vmatmul.mubr.bf16.gmra.mxu0 %v421
  %v771 = vpop.f32.mrf.mxu0
  %v772 = vadd.f32 %v220, %v771
  %v773 = vpop.f32.mrf.mxu0
  %v774 = vadd.f32 %v220, %v773
  %v775 = vpop.f32.mrf.mxu0
  %v776 = vpop.f32.mrf.mxu0
  %777 = vdwg.mxu0
  %778 = vst [vmem:[%s3] sm:$0xff] %v471
  %779 = vst [vmem:[%s3 + $0x8] sm:$0xff] %v473
  %780 = vst [vmem:[%s3 + $0x10] sm:$0xff] %v642
  %781 = vst [vmem:[%s3 + $0x18] sm:$0xff] %v644
  %782 = vst [vmem:[%s3 + $0x20] sm:$0xff] %v475
  %783 = vst [vmem:[%s3 + $0x28] sm:$0xff] %v477
  %784 = vst [vmem:[%s3 + $0x30] sm:$0xff] %v646
  %785 = vst [vmem:[%s3 + $0x38] sm:$0xff] %v648
  %786 = vst [vmem:[%s3 + $0x40] sm:$0xff] %v481
  %787 = vst [vmem:[%s3 + $0x48] sm:$0xff] %v483
  %788 = vst [vmem:[%s3 + $0x50] sm:$0xff] %v652
  %789 = vst [vmem:[%s3 + $0x58] sm:$0xff] %v654
  %790 = vst [vmem:[%s3 + $0x60] sm:$0xff] %v485
  %791 = vst [vmem:[%s3 + $0x68] sm:$0xff] %v487
  %792 = vst [vmem:[%s3 + $0x70] sm:$0xff] %v656
  %793 = vst [vmem:[%s3 + $0x78] sm:$0xff] %v658
  %794 = vst [vmem:[%s3 + $0x80] sm:$0xff] %v491
  %795 = vst [vmem:[%s3 + $0x88] sm:$0xff] %v493
  %796 = vst [vmem:[%s3 + $0x90] sm:$0xff] %v662
  %797 = vst [vmem:[%s3 + $0x98] sm:$0xff] %v664
  %798 = vst [vmem:[%s3 + $0xa0] sm:$0xff] %v495
  %799 = vst [vmem:[%s3 + $0xa8] sm:$0xff] %v497
  %800 = vst [vmem:[%s3 + $0xb0] sm:$0xff] %v666
  %801 = vst [vmem:[%s3 + $0xb8] sm:$0xff] %v668
  %802 = vst [vmem:[%s3 + $0xc0] sm:$0xff] %v501
  %803 = vst [vmem:[%s3 + $0xc8] sm:$0xff] %v503
  %804 = vst [vmem:[%s3 + $0xd0] sm:$0xff] %v672
  %805 = vst [vmem:[%s3 + $0xd8] sm:$0xff] %v674
  %806 = vst [vmem:[%s3 + $0xe0] sm:$0xff] %v505
  %807 = vst [vmem:[%s3 + $0xe8] sm:$0xff] %v507
  %808 = vst [vmem:[%s3 + $0xf0] sm:$0xff] %v676
  %809 = vst [vmem:[%s3 + $0xf8] sm:$0xff] %v678
  %810 = vst [vmem:[%s3 + $0x100] sm:$0xff] %v511
  %811 = vst [vmem:[%s3 + $0x108] sm:$0xff] %v513
  %812 = vst [vmem:[%s3 + $0x110] sm:$0xff] %v682
  %813 = vst [vmem:[%s3 + $0x118] sm:$0xff] %v684
  %814 = vst [vmem:[%s3 + $0x120] sm:$0xff] %v515
  %815 = vst [vmem:[%s3 + $0x128] sm:$0xff] %v517
  %816 = vst [vmem:[%s3 + $0x130] sm:$0xff] %v686
  %817 = vst [vmem:[%s3 + $0x138] sm:$0xff] %v688
  %818 = vst [vmem:[%s3 + $0x140] sm:$0xff] %v521
  %819 = vst [vmem:[%s3 + $0x148] sm:$0xff] %v523
  %820 = vst [vmem:[%s3 + $0x150] sm:$0xff] %v692
  %821 = vst [vmem:[%s3 + $0x158] sm:$0xff] %v694
  %822 = vst [vmem:[%s3 + $0x160] sm:$0xff] %v525
  %823 = vst [vmem:[%s3 + $0x168] sm:$0xff] %v527
  %824 = vst [vmem:[%s3 + $0x170] sm:$0xff] %v696
  %825 = vst [vmem:[%s3 + $0x178] sm:$0xff] %v698
  %826 = vst [vmem:[%s3 + $0x180] sm:$0xff] %v531
  %827 = vst [vmem:[%s3 + $0x188] sm:$0xff] %v533
  %828 = vst [vmem:[%s3 + $0x190] sm:$0xff] %v702
  %829 = vst [vmem:[%s3 + $0x198] sm:$0xff] %v704
  %830 = vst [vmem:[%s3 + $0x1a0] sm:$0xff] %v535
  %831 = vst [vmem:[%s3 + $0x1a8] sm:$0xff] %v537
  %832 = vst [vmem:[%s3 + $0x1b0] sm:$0xff] %v706
  %833 = vst [vmem:[%s3 + $0x1b8] sm:$0xff] %v708
  %834 = vst [vmem:[%s3 + $0x1c0] sm:$0xff] %v541
  %835 = vst [vmem:[%s3 + $0x1c8] sm:$0xff] %v543
  %836 = vst [vmem:[%s3 + $0x1d0] sm:$0xff] %v712
  %837 = vst [vmem:[%s3 + $0x1d8] sm:$0xff] %v714
  %838 = vst [vmem:[%s3 + $0x1e0] sm:$0xff] %v545
  %839 = vst [vmem:[%s3 + $0x1e8] sm:$0xff] %v547
  %840 = vst [vmem:[%s3 + $0x1f0] sm:$0xff] %v716
  %841 = vst [vmem:[%s3 + $0x1f8] sm:$0xff] %v718
  %842 = vst [vmem:[%s3 + $0x200] sm:$0xff] %v551
  %843 = vst [vmem:[%s3 + $0x208] sm:$0xff] %v553
  %844 = vst [vmem:[%s3 + $0x210] sm:$0xff] %v722
  %845 = vst [vmem:[%s3 + $0x218] sm:$0xff] %v724
  %846 = vst [vmem:[%s3 + $0x220] sm:$0xff] %v555
  %847 = vst [vmem:[%s3 + $0x228] sm:$0xff] %v557
  %848 = vst [vmem:[%s3 + $0x230] sm:$0xff] %v726
  %849 = vst [vmem:[%s3 + $0x238] sm:$0xff] %v728
  %850 = vst [vmem:[%s3 + $0x240] sm:$0xff] %v561
  %851 = vst [vmem:[%s3 + $0x248] sm:$0xff] %v563
  %852 = vst [vmem:[%s3 + $0x250] sm:$0xff] %v732
  %853 = vst [vmem:[%s3 + $0x258] sm:$0xff] %v734
  %854 = vst [vmem:[%s3 + $0x260] sm:$0xff] %v565
  %855 = vst [vmem:[%s3 + $0x268] sm:$0xff] %v567
  %856 = vst [vmem:[%s3 + $0x270] sm:$0xff] %v736
  %857 = vst [vmem:[%s3 + $0x278] sm:$0xff] %v738
  %858 = vst [vmem:[%s3 + $0x280] sm:$0xff] %v571
  %859 = vst [vmem:[%s3 + $0x288] sm:$0xff] %v573
  %860 = vst [vmem:[%s3 + $0x290] sm:$0xff] %v742
  %861 = vst [vmem:[%s3 + $0x298] sm:$0xff] %v744
  %862 = vst [vmem:[%s3 + $0x2a0] sm:$0xff] %v575
  %863 = vst [vmem:[%s3 + $0x2a8] sm:$0xff] %v577
  %864 = vst [vmem:[%s3 + $0x2b0] sm:$0xff] %v746
  %865 = vst [vmem:[%s3 + $0x2b8] sm:$0xff] %v748
  %866 = vst [vmem:[%s3 + $0x2c0] sm:$0xff] %v581
  %867 = vst [vmem:[%s3 + $0x2c8] sm:$0xff] %v583
  %868 = vst [vmem:[%s3 + $0x2d0] sm:$0xff] %v752
  %869 = vst [vmem:[%s3 + $0x2d8] sm:$0xff] %v754
  %870 = vst [vmem:[%s3 + $0x2e0] sm:$0xff] %v585
  %871 = vst [vmem:[%s3 + $0x2e8] sm:$0xff] %v587
  %872 = vst [vmem:[%s3 + $0x2f0] sm:$0xff] %v756
  %873 = vst [vmem:[%s3 + $0x2f8] sm:$0xff] %v758
  %874 = vst [vmem:[%s3 + $0x300] sm:$0xff] %v591
  %875 = vst [vmem:[%s3 + $0x308] sm:$0xff] %v593
  %876 = vst [vmem:[%s3 + $0x310] sm:$0xff] %v762
  %877 = vst [vmem:[%s3 + $0x318] sm:$0xff] %v764
  %878 = vst [vmem:[%s3 + $0x320] sm:$0xff] %v595
  %879 = vst [vmem:[%s3 + $0x328] sm:$0xff] %v597
  %880 = vst [vmem:[%s3 + $0x330] sm:$0xff] %v766
  %881 = vst [vmem:[%s3 + $0x338] sm:$0xff] %v768
  %882 = vst [vmem:[%s3 + $0x340] sm:$0xff] %v601
  %883 = vst [vmem:[%s3 + $0x348] sm:$0xff] %v603
  %884 = vst [vmem:[%s3 + $0x350] sm:$0xff] %v772
  %885 = vst [vmem:[%s3 + $0x358] sm:$0xff] %v774
  // Predicated region
  $region14: #{multi_pc_aligned_forward.54} parent=0 // pred_check
    _
  $region15: #{multi_pc_aligned_forward.54} parent=0 // pred_check_branch
    %887 = sbr.rel (0) target = $region17
  $region16: #{multi_pc_aligned_forward.54} parent=0 // pred_region
    _
  $region17: #{multi_pc_aligned_forward.54} parent=0 // pred_fallthru
    _
  // Predicated region
  $region18: #{multi_pc_aligned_forward.54} parent=0 // pred_check
    _
  $region19: #{multi_pc_aligned_forward.54} parent=0 // pred_check_branch
    %889 = sbr.rel (0) target = $region21
  $region20: #{multi_pc_aligned_forward.54} parent=0 // pred_region
    _
  $region21: #{multi_pc_aligned_forward.54} parent=0 // pred_fallthru
    _

// kernel: multi_pc_aligned_forward.55
$region0: #{multi_pc_aligned_forward.55}
  #allocation0 [shape = 'u32[]', space=smem, size = 0x4, offset = 0x4, fixed_abs, tag = 'smem constant byte address 0x4 - core index']
  #allocation1 [shape = 'u32[144,128]{1,0:T(1,128)}', space=vmem, size = 0x12000, scoped, tag = 'internal scratch']
  %s0 = inlined_call_operand.vmem [shape: bf16[8,72], index: 0, kind: input, shape index: {}]
  %s1 = inlined_call_operand.vmem [shape: f32[8,1], index: 1, kind: input, shape index: {}]
  %s2 = inlined_call_operand.vmem [shape: bf16[72,512], index: 2, kind: input, shape index: {}]
  %s3 = inlined_call_operand.vmem [shape: f32[8,512], index: 3, kind: output, shape index: {}]
  %s4 = sld [smem:[#allocation0]]
  $region22: #{multi_pc_aligned_forward.55} parent=0
    _
  %s6 = ssub.s32 1, %s4
  %s7 = scalar_select 0, %s6, %s4
  // Predicated region
  $region2: #{multi_pc_aligned_forward.55} parent=0 // pred_check
    _
  $region3: #{multi_pc_aligned_forward.55} parent=0 // pred_check_branch
    %9 = sbr.rel (0) target = $region5
  $region4: #{multi_pc_aligned_forward.55} parent=0 // pred_region
    _
  $region5: #{multi_pc_aligned_forward.55} parent=0 // pred_fallthru
    _
  // Predicated region
  $region6: #{multi_pc_aligned_forward.55} parent=0 // pred_check
    _
  $region7: #{multi_pc_aligned_forward.55} parent=0 // pred_check_branch
    %11 = sbr.rel (0) target = $region9
  $region8: #{multi_pc_aligned_forward.55} parent=0 // pred_region
    _
  $region9: #{multi_pc_aligned_forward.55} parent=0 // pred_fallthru
    _
  // Predicated region
  $region10: #{multi_pc_aligned_forward.55} parent=0 // pred_check
    _
  $region11: #{multi_pc_aligned_forward.55} parent=0 // pred_check_branch
    %13 = sbr.rel (0) target = $region13
  $region12: #{multi_pc_aligned_forward.55} parent=0 // pred_region
    _
  $region13: #{multi_pc_aligned_forward.55} parent=0 // pred_fallthru
    _
  %v15 = vld [vmem:[%s0] sm:$0xf]
  %v16 = vld [vmem:[%s2] sm:$0xff]
  %v17 = vld [vmem:[%s2 + $0x8] sm:$0xff]
  %v18 = vld [vmem:[%s2 + $0x10] sm:$0xff]
  %v19 = vld [vmem:[%s2 + $0x18] sm:$0xff]
  %v20 = vld [vmem:[%s2 + $0x20] sm:$0xff]
  %v21 = vld [vmem:[%s2 + $0x28] sm:$0xff]
  %v22 = vld [vmem:[%s2 + $0x30] sm:$0xff]
  %v23 = vld [vmem:[%s2 + $0x38] sm:$0xff]
  %v24 = vld [vmem:[%s2 + $0x40] sm:$0xff]
  %v25 = vld [vmem:[%s2 + $0x48] sm:$0xff]
  %v26 = vld [vmem:[%s2 + $0x50] sm:$0xff]
  %v27 = vld [vmem:[%s2 + $0x58] sm:$0xff]
  %v28 = vld [vmem:[%s2 + $0x60] sm:$0xff]
  %v29 = vld [vmem:[%s2 + $0x68] sm:$0xff]
  %v30 = vld [vmem:[%s2 + $0x70] sm:$0xff]
  %v31 = vld [vmem:[%s2 + $0x78] sm:$0xff]
  %v32 = vld [vmem:[%s2 + $0x80] sm:$0xff]
  %v33 = vld [vmem:[%s2 + $0x88] sm:$0xff]
  %v34 = vld [vmem:[%s1] sm:$0xff]
  %36 = vset.pattern.permute.xlu0 0
  %37 = vperm.xlu0 %36, %v34
  %v38 = vpop.permute.xlu0 %37
  %v58 = vunpack.c.l.b16 %v16
  %v59 = vunpack.c.h.b16 %v16
  %v60 = vunpack.c.l.b16 %v17
  %v61 = vunpack.c.h.b16 %v17
  %v62 = vunpack.c.l.b16 %v18
  %v63 = vunpack.c.h.b16 %v18
  %v64 = vunpack.c.l.b16 %v19
  %v65 = vunpack.c.h.b16 %v19
  %v66 = vunpack.c.l.b16 %v20
  %v67 = vunpack.c.h.b16 %v20
  %v68 = vunpack.c.l.b16 %v21
  %v69 = vunpack.c.h.b16 %v21
  %v70 = vunpack.c.l.b16 %v22
  %v71 = vunpack.c.h.b16 %v22
  %v72 = vunpack.c.l.b16 %v23
  %v73 = vunpack.c.h.b16 %v23
  %v74 = vunpack.c.l.b16 %v24
  %v75 = vunpack.c.h.b16 %v24
  %v76 = vunpack.c.l.b16 %v25
  %v77 = vunpack.c.h.b16 %v25
  %v78 = vunpack.c.l.b16 %v26
  %v79 = vunpack.c.h.b16 %v26
  %v80 = vunpack.c.l.b16 %v27
  %v81 = vunpack.c.h.b16 %v27
  %v82 = vunpack.c.l.b16 %v28
  %v83 = vunpack.c.h.b16 %v28
  %v84 = vunpack.c.l.b16 %v29
  %v85 = vunpack.c.h.b16 %v29
  %v86 = vunpack.c.l.b16 %v30
  %v87 = vunpack.c.h.b16 %v30
  %v88 = vunpack.c.l.b16 %v31
  %v89 = vunpack.c.h.b16 %v31
  %v90 = vunpack.c.l.b16 %v32
  %v91 = vunpack.c.h.b16 %v32
  %v92 = vunpack.c.l.b16 %v33
  %v93 = vunpack.c.h.b16 %v33
  %v94 = vpack.c.b16 %v62, %v58
  %v95 = vpack.c.b16 %v63, %v59
  %v96 = vpack.c.b16 %v64, %v60
  %v97 = vpack.c.b16 %v65, %v61
  %v98 = vpack.c.b16 %v70, %v66
  %v99 = vpack.c.b16 %v71, %v67
  %v100 = vpack.c.b16 %v72, %v68
  %v101 = vpack.c.b16 %v73, %v69
  %v102 = vpack.c.b16 %v78, %v74
  %v103 = vpack.c.b16 %v79, %v75
  %v104 = vpack.c.b16 %v80, %v76
  %v105 = vpack.c.b16 %v81, %v77
  %v106 = vpack.c.b16 %v86, %v82
  %v107 = vpack.c.b16 %v87, %v83
  %v108 = vpack.c.b16 %v88, %v84
  %v109 = vpack.c.b16 %v89, %v85
  %v110 = vpack.c.b16 %v90, %v90
  %v111 = vpack.c.b16 %v91, %v91
  %v112 = vpack.c.b16 %v92, %v92
  %v113 = vpack.c.b16 %v93, %v93
  %vm130 = vcmask 588800
  %v132 = vsel %vm130, %v15, 0
  %vm134 = vcmask 1043456
  %v136 = vsel %vm134, %v110, 0
  %v139 = vsel %vm134, %v111, 0
  %v142 = vsel %vm134, %v112, 0
  %v145 = vsel %vm134, %v113, 0
  %147 = vmatprep.subr.bf16.mxu0 0
  %148 = vmatpush1.bf16.msra.mxu0 0
  %149 = vmatprep.subr.bf16.mxu0 0
  %150 = vmatpush1.bf16.msra.mxu0 0
  %151 = vmatprep.subr.bf16.mxu0 0
  %152 = vmatpush1.bf16.msra.mxu0 0
  %153 = vmatprep.subr.bf16.mxu0 %v139
  %154 = vmatpush1.bf16.msra.mxu0 %v136
  %155 = vmatprep.subr.bf16.mxu0 %v107
  %156 = vmatpush1.bf16.msra.mxu0 %v106
  %157 = vmatprep.subr.bf16.mxu0 %v103
  %158 = vmatpush1.bf16.msra.mxu0 %v102
  %159 = vmatprep.subr.bf16.mxu0 %v99
  %160 = vmatpush1.bf16.msra.mxu0 %v98
  %161 = vmatprep.subr.bf16.mxu0 %v95
  %162 = vmatpush1.bf16.msra.mxu0 %v94
  %163 = vmatprep.subr.bf16.mxu0 0
  %164 = vmatpush2.bf16.msra.mxu0 0
  %165 = vmatprep.subr.bf16.mxu0 0
  %166 = vmatpush2.bf16.msra.mxu0 0
  %167 = vmatprep.subr.bf16.mxu0 0
  %168 = vmatpush2.bf16.msra.mxu0 0
  %169 = vmatprep.subr.bf16.mxu0 0
  %170 = vmatpush2.bf16.msra.mxu0 0
  %171 = vmatprep.subr.bf16.mxu0 0
  %172 = vmatpush2.bf16.msra.mxu0 0
  %173 = vmatprep.subr.bf16.mxu0 0
  %174 = vmatpush2.bf16.msra.mxu0 0
  %175 = vmatprep.subr.bf16.mxu0 0
  %176 = vmatpush2.bf16.msra.mxu0 0
  %177 = vmatprep.subr.bf16.mxu0 0
  %178 = vmatpush2.bf16.msra.mxu0 0
  %179 = vmatprep.mubr.bf16.mxu0 0
  %180 = vmatmul.mubr.bf16.gmra.mxu0 %v132
  %v181 = vpop.f32.mrf.mxu0
  %v182 = vadd.f32 %v38, %v181
  %v183 = vpop.f32.mrf.mxu0
  %v184 = vadd.f32 %v38, %v183
  %v185 = vpop.f32.mrf.mxu0
  %v186 = vpop.f32.mrf.mxu0
  %187 = vdwg.mxu0
  %188 = vmatprep.subr.bf16.mxu0 0
  %189 = vmatpush1.bf16.msra.mxu0 0
  %190 = vmatprep.subr.bf16.mxu0 0
  %191 = vmatpush1.bf16.msra.mxu0 0
  %192 = vmatprep.subr.bf16.mxu0 0
  %193 = vmatpush1.bf16.msra.mxu0 0
  %194 = vmatprep.subr.bf16.mxu0 %v145
  %195 = vmatpush1.bf16.msra.mxu0 %v142
  %196 = vmatprep.subr.bf16.mxu0 %v109
  %197 = vmatpush1.bf16.msra.mxu0 %v108
  %198 = vmatprep.subr.bf16.mxu0 %v105
  %199 = vmatpush1.bf16.msra.mxu0 %v104
  %200 = vmatprep.subr.bf16.mxu0 %v101
  %201 = vmatpush1.bf16.msra.mxu0 %v100
  %202 = vmatprep.subr.bf16.mxu0 %v97
  %203 = vmatpush1.bf16.msra.mxu0 %v96
  %204 = vmatprep.subr.bf16.mxu0 0
  %205 = vmatpush2.bf16.msra.mxu0 0
  %206 = vmatprep.subr.bf16.mxu0 0
  %207 = vmatpush2.bf16.msra.mxu0 0
  %208 = vmatprep.subr.bf16.mxu0 0
  %209 = vmatpush2.bf16.msra.mxu0 0
  %210 = vmatprep.subr.bf16.mxu0 0
  %211 = vmatpush2.bf16.msra.mxu0 0
  %212 = vmatprep.subr.bf16.mxu0 0
  %213 = vmatpush2.bf16.msra.mxu0 0
  %214 = vmatprep.subr.bf16.mxu0 0
  %215 = vmatpush2.bf16.msra.mxu0 0
  %216 = vmatprep.subr.bf16.mxu0 0
  %217 = vmatpush2.bf16.msra.mxu0 0
  %218 = vmatprep.subr.bf16.mxu0 0
  %219 = vmatpush2.bf16.msra.mxu0 0
  %220 = vmatprep.mubr.bf16.mxu0 0
  %221 = vmatmul.mubr.bf16.gmra.mxu0 %v132
  %v222 = vpop.f32.mrf.mxu0
  %v223 = vadd.f32 %v38, %v222
  %v224 = vpop.f32.mrf.mxu0
  %v225 = vadd.f32 %v38, %v224
  %v226 = vpop.f32.mrf.mxu0
  %v227 = vpop.f32.mrf.mxu0
  %228 = vdwg.mxu0
  %229 = vst [vmem:[%s3] sm:$0xff] %v182
  %230 = vst [vmem:[%s3 + $0x8] sm:$0xff] %v184
  %231 = vst [vmem:[%s3 + $0x10] sm:$0xff] %v223
  %232 = vst [vmem:[%s3 + $0x18] sm:$0xff] %v225
  // Predicated region
  $region14: #{multi_pc_aligned_forward.55} parent=0 // pred_check
    _
  $region15: #{multi_pc_aligned_forward.55} parent=0 // pred_check_branch
    %234 = sbr.rel (0) target = $region17
  $region16: #{multi_pc_aligned_forward.55} parent=0 // pred_region
    _
  $region17: #{multi_pc_aligned_forward.55} parent=0 // pred_fallthru
    _
  // Predicated region
  $region18: #{multi_pc_aligned_forward.55} parent=0 // pred_check
    _
  $region19: #{multi_pc_aligned_forward.55} parent=0 // pred_check_branch
    %236 = sbr.rel (0) target = $region21
  $region20: #{multi_pc_aligned_forward.55} parent=0 // pred_region
    _
  $region21: #{multi_pc_aligned_forward.55} parent=0 // pred_fallthru
    _

</llo_original>
